<compile_context>
chip_gen: v7x
topology: tpu7x:2x2x1
jax: 0.10.0
libtpu: 0.0.40
codegen_flags: <defaults>
</compile_context>

<pallas_src>
import functools

import jax
import jax.numpy as jnp
from jax import lax
from jax.experimental import pallas as pl
from jax.experimental.pallas import tpu as pltpu


def _bn_kernel(x_ref, gb_ref, o_ref, *, eps, inv_s):
    # x_ref: (N, C_TILE, HW)   gb_ref: (C_TILE, 2) [gamma | beta]   o_ref: (N, C_TILE, HW)
    x = x_ref[...].astype(jnp.float32)                     # (N, c_tile, HW)
    N, c_tile, HW = x.shape

    ones = jnp.ones((HW, 1), jnp.float32)
    s1 = jnp.zeros((c_tile, 1), jnp.float32)               # sum(x)   per channel
    s2 = jnp.zeros((c_tile, 1), jnp.float32)               # sum(x^2) per channel
    # N is static (and =1 for this module); unrolled 2-D MXU dots keep lowering simple.
    for n in range(N):
        xn = x[n]                                           # (c_tile, HW)
        s1 = s1 + jnp.dot(xn, ones, preferred_element_type=jnp.float32)
        s2 = s2 + jnp.dot(xn * xn, ones, preferred_element_type=jnp.float32)

    mean = s1 * inv_s                                       # (c_tile, 1)
    var = jnp.maximum(s2 * inv_s - mean * mean, 0.0)        # biased 1/S variance
    gb = gb_ref[...].astype(jnp.float32)                    # (c_tile, 2)
    gamma = gb[:, 0:1]
    beta = gb[:, 1:2]
    scale = lax.rsqrt(var + eps) * gamma                    # (c_tile, 1)
    shift = beta - mean * scale                             # (c_tile, 1)

    # One FMA per element; x is read straight from the input VMEM buffer.
    o_ref[...] = (x * scale[None] + shift[None]).astype(o_ref.dtype)


def batchnorm2d_pallas(x_nchw, gamma, beta, *, eps=1e-3, num_blocks=4):
    N, C, H, W = x_nchw.shape
    HW = H * W
    S = N * HW

    # Channel tile: split C into contiguous blocks (megacore sharding on v7x,
    # DMA/compute overlap on v5e/v6e). Fall back to one full-C block if the split
    # would violate the sublane-divisibility rule.
    if num_blocks > 1 and C % num_blocks == 0 and (C // num_blocks) % 8 == 0:
        c_tile = C // num_blocks
    else:
        c_tile = C
    grid = (C // c_tile,)

    # Free views of the NCHW layout (no HBM transpose traffic).
    x3 = x_nchw.reshape(N, C, HW)
    gb = jnp.stack([gamma, beta], axis=-1)                  # (C, 2): one small DMA

    kernel = functools.partial(_bn_kernel, eps=float(eps), inv_s=1.0 / float(S))

    out3 = pl.pallas_call(
        kernel,
        out_shape=jax.ShapeDtypeStruct((N, C, HW), x_nchw.dtype),
        grid_spec=pltpu.PrefetchScalarGridSpec(
            num_scalar_prefetch=0,
            grid=grid,
            in_specs=[
                pl.BlockSpec((N, c_tile, HW), lambda j: (0, j, 0)),  # x
                pl.BlockSpec((c_tile, 2), lambda j: (j, 0)),         # [gamma|beta]
            ],
            out_specs=pl.BlockSpec((N, c_tile, HW), lambda j: (0, j, 0)),
        ),
        compiler_params=pltpu.CompilerParams(
            dimension_semantics=("parallel",),
        ),
    )(x3, gb)

    return out3.reshape(N, C, H, W)


if __name__ == "__main__":
    key = jax.random.PRNGKey(0)
    kx, kg, kb = jax.random.split(key, 3)

    # Shapes from the original module: x460 = randn([1, 1536, 7, 7]).
    N, C, H, W = 1, 1536, 7, 7
    x = jax.random.normal(kx, (N, C, H, W), dtype=jnp.float32)
    # PyTorch default init is gamma=1, beta=0; perturb so the affine path is exercised.
    gamma = 1.0 + 0.1 * jax.random.normal(kg, (C,), dtype=jnp.float32)
    beta = 0.1 * jax.random.normal(kb, (C,), dtype=jnp.float32)

    out = batchnorm2d_pallas(x, gamma, beta, eps=1e-3)
    out = jax.block_until_ready(out)

    # Pure-JAX reference (training-mode BatchNorm2d: batch stats over N, H, W).
    mean = jnp.mean(x, axis=(0, 2, 3), keepdims=True)
    var = jnp.mean((x - mean) ** 2, axis=(0, 2, 3), keepdims=True)
    ref = (x - mean) * jax.lax.rsqrt(var + 1e-3) * gamma[None, :, None, None] \
          + beta[None, :, None, None]

    assert out.shape == (N, C, H, W)
    assert jnp.allclose(out, ref, atol=1e-4, rtol=1e-4)
    print("KERNEL_OK")
</pallas_src>

<mosaic_0001>
module attributes {stable_mosaic.version = 11 : i64} {
  func.func @_bn_kernel(%arg0: i32, %arg1: memref<1x384x49xf32, #tpu.memory_space<vmem>>, %arg2: memref<384x2xf32, #tpu.memory_space<vmem>>, %arg3: memref<1x384x49xf32, #tpu.memory_space<vmem>>) attributes {dimension_semantics = [#tpu.dimension_semantics<parallel>], iteration_bounds = array<i64: 4>, scalar_prefetch = 0 : i64, scratch_operands = 0 : i64, tpu.core_type = #tpu.core_type<tc>, window_params = [{transform_indices = @transform_0, window_bounds = array<i64: 1, 384, 49>}, {transform_indices = @transform_1, window_bounds = array<i64: 384, 2>}, {transform_indices = @transform_2, window_bounds = array<i64: 1, 384, 49>}]} {
    %c0 = arith.constant 0 : index
    %c0_0 = arith.constant 0 : index
    %c0_1 = arith.constant 0 : index
    %0 = vector.load %arg1[%c0, %c0_0, %c0_1] : memref<1x384x49xf32, #tpu.memory_space<vmem>>, vector<1x384x49xf32>
    %cst = arith.constant 1.000000e+00 : f32
    %1 = vector.broadcast %cst : f32 to vector<49x1xf32>
    %cst_2 = arith.constant 0.000000e+00 : f32
    %2 = vector.broadcast %cst_2 : f32 to vector<384x1xf32>
    %cst_3 = arith.constant 0.000000e+00 : f32
    %3 = vector.broadcast %cst_3 : f32 to vector<384x1xf32>
    %4 = vector.shape_cast %0 : vector<1x384x49xf32> to vector<384x49xf32>
    %cst_4 = arith.constant dense<0.000000e+00> : vector<384x1xf32>
    %5 = tpu.matmul %4, %1, %cst_4 {dimension_numbers = #tpu.dot_dimension_numbers<[1], [0], [0], [1], [0, 0, 1, 1], [], []>} : vector<384x49xf32>, vector<49x1xf32>, vector<384x1xf32> -> vector<384x1xf32>
    %6 = arith.addf %2, %5 : vector<384x1xf32>
    %7 = arith.mulf %4, %4 : vector<384x49xf32>
    %cst_5 = arith.constant dense<0.000000e+00> : vector<384x1xf32>
    %8 = tpu.matmul %7, %1, %cst_5 {dimension_numbers = #tpu.dot_dimension_numbers<[1], [0], [0], [1], [0, 0, 1, 1], [], []>} : vector<384x49xf32>, vector<49x1xf32>, vector<384x1xf32> -> vector<384x1xf32>
    %9 = arith.addf %3, %8 : vector<384x1xf32>
    %cst_6 = arith.constant 0.0204081628 : f32
    %10 = vector.broadcast %cst_6 : f32 to vector<384x1xf32>
    %11 = arith.mulf %6, %10 : vector<384x1xf32>
    %cst_7 = arith.constant 0.0204081628 : f32
    %12 = vector.broadcast %cst_7 : f32 to vector<384x1xf32>
    %13 = arith.mulf %9, %12 : vector<384x1xf32>
    %14 = arith.mulf %11, %11 : vector<384x1xf32>
    %15 = arith.subf %13, %14 : vector<384x1xf32>
    %cst_8 = arith.constant 0.000000e+00 : f32
    %16 = vector.broadcast %cst_8 : f32 to vector<384x1xf32>
    %17 = arith.maximumf %15, %16 : vector<384x1xf32>
    %c0_9 = arith.constant 0 : index
    %c0_10 = arith.constant 0 : index
    %18 = vector.load %arg2[%c0_9, %c0_10] : memref<384x2xf32, #tpu.memory_space<vmem>>, vector<384x2xf32>
    %19 = vector.extract_strided_slice %18 {offsets = [0, 0], sizes = [384, 1], strides = [1, 1]} : vector<384x2xf32> to vector<384x1xf32>
    %20 = vector.extract_strided_slice %18 {offsets = [0, 1], sizes = [384, 1], strides = [1, 1]} : vector<384x2xf32> to vector<384x1xf32>
    %cst_11 = arith.constant 1.000000e-03 : f32
    %21 = vector.broadcast %cst_11 : f32 to vector<384x1xf32>
    %22 = arith.addf %17, %21 : vector<384x1xf32>
    %23 = math.rsqrt %22 : vector<384x1xf32>
    %24 = arith.mulf %23, %19 : vector<384x1xf32>
    %25 = arith.mulf %11, %24 : vector<384x1xf32>
    %26 = arith.subf %20, %25 : vector<384x1xf32>
    %27 = vector.shape_cast %24 : vector<384x1xf32> to vector<1x384x1xf32>
    %28 = vector.broadcast %27 : vector<1x384x1xf32> to vector<1x384x49xf32>
    %29 = arith.mulf %0, %28 : vector<1x384x49xf32>
    %30 = vector.shape_cast %26 : vector<384x1xf32> to vector<1x384x1xf32>
    %31 = vector.broadcast %30 : vector<1x384x1xf32> to vector<1x384x49xf32>
    %32 = arith.addf %29, %31 : vector<1x384x49xf32>
    %c0_12 = arith.constant 0 : index
    %c0_13 = arith.constant 0 : index
    %c0_14 = arith.constant 0 : index
    %33 = vector.load %arg3[%c0_12, %c0_13, %c0_14] : memref<1x384x49xf32, #tpu.memory_space<vmem>>, vector<1x384x49xf32>
    tpu.vector_store %arg3[%c0_12, %c0_13, %c0_14], %32 {strides = array<i32>} : memref<1x384x49xf32, #tpu.memory_space<vmem>>, vector<1x384x49xf32>,
    return
  }
  func.func @transform_0(%arg0: i32) -> (i32, i32, i32) {
    %c0_i32 = arith.constant 0 : i32
    %c0_i32_0 = arith.constant 0 : i32
    %c0_i32_1 = arith.constant 0 : i32
    return %c0_i32, %arg0, %c0_i32_0 : i32, i32, i32
  }
  func.func @transform_1(%arg0: i32) -> (i32, i32) {
    %c0_i32 = arith.constant 0 : i32
    %c0_i32_0 = arith.constant 0 : i32
    return %arg0, %c0_i32 : i32, i32
  }
  func.func @transform_2(%arg0: i32) -> (i32, i32, i32) {
    %c0_i32 = arith.constant 0 : i32
    %c0_i32_0 = arith.constant 0 : i32
    %c0_i32_1 = arith.constant 0 : i32
    return %c0_i32, %arg0, %c0_i32_0 : i32, i32, i32
  }
}

</mosaic_0001>

<llo_original>
// kernel: tpu_custom_call.1
$region0: #{tpu_custom_call.1}
  #allocation0 [shape = 'u32[]', space=smem, size = 0x4, offset = 0x4, fixed_abs, tag = 'smem constant byte address 0x4 - core index']
  #allocation1 [shape = 'u32[144,128]{1,0:T(1,128)}', space=vmem, size = 0x12000, scoped, tag = 'internal scratch']
  %s0 = inlined_call_operand.vmem [shape: f32[1,1536,49], index: 0, kind: input, shape index: {}]
  %s1 = inlined_call_operand.vmem [shape: f32[1536,2], index: 1, kind: input, shape index: {}]
  %s2 = inlined_call_operand.vmem [shape: f32[1,1536,49], index: 2, kind: output, shape index: {}]
  %s3 = sld [smem:[#allocation0]]
  $region41: #{tpu_custom_call.1} parent=0
    _
  %s5 = ssub.s32 1, %s3
  %s6 = scalar_select 0, %s5, %s3
  loop: start=0, step=1, limit=6
  $region2: #{tpu_custom_call.1} parent=0 // loop_pre_header
    _
  $region3: #{tpu_custom_call.1} parent=0 // loop_header
    %s8 = sphi 0, %s12
    %p9 = scmp.ge.s32.totalorder %s8, 6
    %s18 = sphi 0, %s20
    %s21 = sphi 0, %s18
    %s22 = sphi 0, %s21
    %s38 = sphi 0, %s22
    %s44 = sphi 0, %s46
    %s47 = sphi 0, %s44
    %s48 = sphi 0, %s47
    %s64 = sphi 0, %s48
    %s70 = sphi 0, %s72
    %s73 = sphi 0, %s70
    %s74 = sphi 0, %s73
    %s90 = sphi 0, %s74
  $region4: #{tpu_custom_call.1} parent=0 // loop_header_branch
    %11 = sbr.rel (%p9) target = $region8
  $region5: #{tpu_custom_call.1} parent=0 // loop_body
    %s13 = ssub.s32 %s8, 1
    %s14 = ssub.s32 %s8, 2
    %s15 = sadd.s32 %s8, 1
    %s16 = ssub.s32 %s8, %s15
    %p17 = scmp.eq.s32.totalorder %s16, 0
    %s19 = sadd.s32 %s18, 1
    %s20 = scalar_select %p17, %s18, %s19
    %p23 = pneg %p17
    %p24 = scmp.eq.s32.totalorder %s8, 3
    %p25 = por %p23, %p24
    %p26 = scmp.ne.s32.totalorder %s18, %s21
    %p27 = scmp.eq.s32.totalorder %s8, 0
    %p28 = por %p26, %p27
    %p29 = scmp.ne.s32.totalorder %s18, %s21
    %p30 = scmp.eq.s32.totalorder %s13, 3
    %p31 = por %p29, %p30
    %p32 = scmp.ne.s32.totalorder %s21, %s22
    %p33 = scmp.eq.s32.totalorder %s13, 0
    %p34 = por %p32, %p33
    %p35 = scmp.ne.s32.totalorder %s21, %s22
    %p36 = scmp.eq.s32.totalorder %s14, 3
    %p37 = por %p35, %p36
    %p39 = scmp.ne.s32.totalorder %s22, %s38
    %p40 = scmp.eq.s32.totalorder %s14, 0
    %p41 = por %p39, %p40
    %s42 = ssub.s32 %s8, %s15
    %p43 = scmp.eq.s32.totalorder %s42, 0
    %s45 = sadd.s32 %s44, 1
    %s46 = scalar_select %p43, %s44, %s45
    %p49 = pneg %p43
    %p50 = scmp.eq.s32.totalorder %s8, 3
    %p51 = por %p49, %p50
    %p52 = scmp.ne.s32.totalorder %s44, %s47
    %p53 = scmp.eq.s32.totalorder %s8, 0
    %p54 = por %p52, %p53
    %p55 = scmp.ne.s32.totalorder %s44, %s47
    %p56 = scmp.eq.s32.totalorder %s13, 3
    %p57 = por %p55, %p56
    %p58 = scmp.ne.s32.totalorder %s47, %s48
    %p59 = scmp.eq.s32.totalorder %s13, 0
    %p60 = por %p58, %p59
    %p61 = scmp.ne.s32.totalorder %s47, %s48
    %p62 = scmp.eq.s32.totalorder %s14, 3
    %p63 = por %p61, %p62
    %p65 = scmp.ne.s32.totalorder %s48, %s64
    %p66 = scmp.eq.s32.totalorder %s14, 0
    %p67 = por %p65, %p66
    %s68 = ssub.s32 %s8, %s15
    %p69 = scmp.eq.s32.totalorder %s68, 0
    %s71 = sadd.s32 %s70, 1
    %s72 = scalar_select %p69, %s70, %s71
    %p75 = pneg %p69
    %p76 = scmp.eq.s32.totalorder %s8, 3
    %p77 = por %p75, %p76
    %p78 = scmp.ne.s32.totalorder %s70, %s73
    %p79 = scmp.eq.s32.totalorder %s8, 0
    %p80 = por %p78, %p79
    %p81 = scmp.ne.s32.totalorder %s70, %s73
    %p82 = scmp.eq.s32.totalorder %s13, 3
    %p83 = por %p81, %p82
    %p84 = scmp.ne.s32.totalorder %s73, %s74
    %p85 = scmp.eq.s32.totalorder %s13, 0
    %p86 = por %p84, %p85
    %p87 = scmp.ne.s32.totalorder %s73, %s74
    %p88 = scmp.eq.s32.totalorder %s14, 3
    %p89 = por %p87, %p88
    %p91 = scmp.ne.s32.totalorder %s74, %s90
    %p92 = scmp.eq.s32.totalorder %s14, 0
    %p93 = por %p91, %p92
    %p94 = scmp.le.s32.totalorder 1, %s8
    %p95 = scmp.lt.s32.totalorder %s8, 5
    %p96 = pnand %p94, %p95
    %p97 = pneg %p96
    // Predicated region
    $region9: #{tpu_custom_call.1} parent=5 // pred_check
      _
    $region10: #{tpu_custom_call.1} parent=5 // pred_check_branch
      %99 = sbr.rel (%p96) target = $region12
    $region11: #{tpu_custom_call.1} parent=5 // pred_region
      %s100 = ssub.s32 %s8, 1
    $region12: #{tpu_custom_call.1} parent=5 // pred_fallthru
      _
    %p101 = scmp.lt.s32.totalorder %s8, 4
    // Predicated region
    $region13: #{tpu_custom_call.1} parent=5 // pred_check
      %p102 = pneg %p101
    $region14: #{tpu_custom_call.1} parent=5 // pred_check_branch
      %104 = sbr.rel (%p102) target = $region16
    $region15: #{tpu_custom_call.1} parent=5 // pred_region
      // Predicated region
      $region17: #{tpu_custom_call.1} parent=15 // pred_check
        %p105 = pneg %p28
      $region18: #{tpu_custom_call.1} parent=15 // pred_check_branch
        %107 = sbr.rel (%p105) target = $region20
      $region19: #{tpu_custom_call.1} parent=15 // pred_region
        %s108 = smul.u32 48, %s8
        %p109 = scmp.lt.s32.totalorder %s108, 191
        %s110 = scalar_select %p109, %s108, 191
        %s111 = smul.addr %s110, 8
        %s112 = scalar_lea.vmem %s0, %s111
        %s113 = smul.u32 48, %s8
      $region20: #{tpu_custom_call.1} parent=15 // pred_fallthru
        _
      // Predicated region
      $region21: #{tpu_custom_call.1} parent=15 // pred_check
        %p114 = pneg %p54
      $region22: #{tpu_custom_call.1} parent=15 // pred_check_branch
        %116 = sbr.rel (%p114) target = $region24
      $region23: #{tpu_custom_call.1} parent=15 // pred_region
        %s117 = smul.u32 48, %s8
        %p118 = scmp.lt.s32.totalorder %s117, 191
        %s119 = scalar_select %p118, %s117, 191
        %s120 = smul.addr %s119, 8
        %s121 = scalar_lea.vmem %s1, %s120
        %s122 = smul.u32 48, %s8
      $region24: #{tpu_custom_call.1} parent=15 // pred_fallthru
        _
    $region16: #{tpu_custom_call.1} parent=5 // pred_fallthru
      _
    %p123 = scmp.le.s32.totalorder 1, %s8
    %p124 = scmp.lt.s32.totalorder %s8, 5
    %p125 = pnand %p123, %p124
    %p126 = pneg %p125
    // Predicated region
    $region25: #{tpu_custom_call.1} parent=5 // pred_check
      _
    $region26: #{tpu_custom_call.1} parent=5 // pred_check_branch
      %128 = sbr.rel (%p125) target = $region28
    $region27: #{tpu_custom_call.1} parent=5 // pred_region
      %s129 = ssub.s32 %s8, 1
      %s130 = smul.u32 48, %s13
      %p131 = scmp.lt.s32.totalorder %s130, 191
      %s132 = scalar_select %p131, %s130, 191
      %s133 = smul.addr %s132, 8
      %s134 = scalar_lea.vmem %s0, %s133
      %p135 = pneg %p34
      %p136 = pneg %p31
      %s137 = smul.u32 48, %s13
      %p138 = scmp.lt.s32.totalorder %s137, 191
      %s139 = scalar_select %p138, %s137, 191
      %s140 = smul.addr %s139, 8
      %s141 = scalar_lea.vmem %s1, %s140
      %p142 = pneg %p60
      %p143 = pneg %p57
      %p144 = pneg %p86
      %p145 = pneg %p83
      %s146 = smul.u32 48, %s13
      %p147 = scmp.lt.s32.totalorder %s146, 191
      %s148 = scalar_select %p147, %s146, 191
      %s149 = smul.addr %s148, 8
      %s150 = scalar_lea.vmem %s2, %s149
      %s151 = smul.u32 48, %s13
      %p152 = scmp.lt.s32.totalorder %s151, 191
      %s153 = scalar_select %p152, %s151, 191
      %s154 = smul.addr %s153, 8
      %s155 = scalar_lea.vmem %s0, %s154
      %s156 = smul.u32 48, %s13
      %s157 = smul.u32 48, %s13
      %p158 = scmp.lt.s32.totalorder %s157, 191
      %s159 = scalar_select %p158, %s157, 191
      %s160 = smul.addr %s159, 8
      %s161 = scalar_lea.vmem %s1, %s160
      %s162 = smul.u32 48, %s13
      %s163 = smul.u32 48, %s13
      %p164 = scmp.lt.s32.totalorder %s163, 191
      %s165 = scalar_select %p164, %s163, 191
      %s166 = smul.addr %s165, 8
      %s167 = scalar_lea.vmem %s2, %s166
      %s168 = smul.u32 48, %s13
      %v169 = vld [vmem:[%s155] sm:$0xff]
      %v170 = vld [vmem:[%s155 + $0x8] sm:$0xff]
      %v171 = vld [vmem:[%s155 + $0x10] sm:$0xff]
      %v172 = vld [vmem:[%s155 + $0x18] sm:$0xff]
      %v173 = vld [vmem:[%s155 + $0x20] sm:$0xff]
      %v174 = vld [vmem:[%s155 + $0x28] sm:$0xff]
      %v175 = vld [vmem:[%s155 + $0x30] sm:$0xff]
      %v176 = vld [vmem:[%s155 + $0x38] sm:$0xff]
      %v177 = vld [vmem:[%s155 + $0x40] sm:$0xff]
      %v178 = vld [vmem:[%s155 + $0x48] sm:$0xff]
      %v179 = vld [vmem:[%s155 + $0x50] sm:$0xff]
      %v180 = vld [vmem:[%s155 + $0x58] sm:$0xff]
      %v181 = vld [vmem:[%s155 + $0x60] sm:$0xff]
      %v182 = vld [vmem:[%s155 + $0x68] sm:$0xff]
      %v183 = vld [vmem:[%s155 + $0x70] sm:$0xff]
      %v184 = vld [vmem:[%s155 + $0x78] sm:$0xff]
      %v185 = vld [vmem:[%s155 + $0x80] sm:$0xff]
      %v186 = vld [vmem:[%s155 + $0x88] sm:$0xff]
      %v187 = vld [vmem:[%s155 + $0x90] sm:$0xff]
      %v188 = vld [vmem:[%s155 + $0x98] sm:$0xff]
      %v189 = vld [vmem:[%s155 + $0xa0] sm:$0xff]
      %v190 = vld [vmem:[%s155 + $0xa8] sm:$0xff]
      %v191 = vld [vmem:[%s155 + $0xb0] sm:$0xff]
      %v192 = vld [vmem:[%s155 + $0xb8] sm:$0xff]
      %v193 = vld [vmem:[%s155 + $0xc0] sm:$0xff]
      %v194 = vld [vmem:[%s155 + $0xc8] sm:$0xff]
      %v195 = vld [vmem:[%s155 + $0xd0] sm:$0xff]
      %v196 = vld [vmem:[%s155 + $0xd8] sm:$0xff]
      %v197 = vld [vmem:[%s155 + $0xe0] sm:$0xff]
      %v198 = vld [vmem:[%s155 + $0xe8] sm:$0xff]
      %v199 = vld [vmem:[%s155 + $0xf0] sm:$0xff]
      %v200 = vld [vmem:[%s155 + $0xf8] sm:$0xff]
      %v201 = vld [vmem:[%s155 + $0x100] sm:$0xff]
      %v202 = vld [vmem:[%s155 + $0x108] sm:$0xff]
      %v203 = vld [vmem:[%s155 + $0x110] sm:$0xff]
      %v204 = vld [vmem:[%s155 + $0x118] sm:$0xff]
      %v205 = vld [vmem:[%s155 + $0x120] sm:$0xff]
      %v206 = vld [vmem:[%s155 + $0x128] sm:$0xff]
      %v207 = vld [vmem:[%s155 + $0x130] sm:$0xff]
      %v208 = vld [vmem:[%s155 + $0x138] sm:$0xff]
      %v209 = vld [vmem:[%s155 + $0x140] sm:$0xff]
      %v210 = vld [vmem:[%s155 + $0x148] sm:$0xff]
      %v211 = vld [vmem:[%s155 + $0x150] sm:$0xff]
      %v212 = vld [vmem:[%s155 + $0x158] sm:$0xff]
      %v213 = vld [vmem:[%s155 + $0x160] sm:$0xff]
      %v214 = vld [vmem:[%s155 + $0x168] sm:$0xff]
      %v215 = vld [vmem:[%s155 + $0x170] sm:$0xff]
      %v216 = vld [vmem:[%s155 + $0x178] sm:$0xff]
      %vm217 = vcmask 400384
      %v219 = vsel %vm217, %v169, 0
      %v222 = vsel %vm217, %v170, 0
      %v225 = vsel %vm217, %v171, 0
      %v228 = vsel %vm217, %v172, 0
      %v231 = vsel %vm217, %v173, 0
      %v234 = vsel %vm217, %v174, 0
      %v237 = vsel %vm217, %v175, 0
      %v240 = vsel %vm217, %v176, 0
      %v243 = vsel %vm217, %v177, 0
      %v246 = vsel %vm217, %v178, 0
      %v249 = vsel %vm217, %v179, 0
      %v252 = vsel %vm217, %v180, 0
      %v255 = vsel %vm217, %v181, 0
      %v258 = vsel %vm217, %v182, 0
      %v261 = vsel %vm217, %v183, 0
      %v264 = vsel %vm217, %v184, 0
      %v267 = vsel %vm217, %v185, 0
      %v270 = vsel %vm217, %v186, 0
      %v273 = vsel %vm217, %v187, 0
      %v276 = vsel %vm217, %v188, 0
      %v279 = vsel %vm217, %v189, 0
      %v282 = vsel %vm217, %v190, 0
      %v285 = vsel %vm217, %v191, 0
      %v288 = vsel %vm217, %v192, 0
      %v291 = vsel %vm217, %v193, 0
      %v294 = vsel %vm217, %v194, 0
      %v297 = vsel %vm217, %v195, 0
      %v300 = vsel %vm217, %v196, 0
      %v303 = vsel %vm217, %v197, 0
      %v306 = vsel %vm217, %v198, 0
      %v309 = vsel %vm217, %v199, 0
      %v312 = vsel %vm217, %v200, 0
      %v315 = vsel %vm217, %v201, 0
      %v318 = vsel %vm217, %v202, 0
      %v321 = vsel %vm217, %v203, 0
      %v324 = vsel %vm217, %v204, 0
      %v327 = vsel %vm217, %v205, 0
      %v330 = vsel %vm217, %v206, 0
      %v333 = vsel %vm217, %v207, 0
      %v336 = vsel %vm217, %v208, 0
      %v339 = vsel %vm217, %v209, 0
      %v342 = vsel %vm217, %v210, 0
      %v345 = vsel %vm217, %v211, 0
      %v348 = vsel %vm217, %v212, 0
      %v351 = vsel %vm217, %v213, 0
      %v354 = vsel %vm217, %v214, 0
      %v357 = vsel %vm217, %v215, 0
      %v360 = vsel %vm217, %v216, 0
      %vm362 = vcmask 1040384
      %v364 = vsel %vm362, 1.0, 0
      %366 = vmatprep.subr.mxu0 0.0
      %367 = vmatpush1.msra.mxu0 1.0
      %368 = vmatprep.subr.mxu0 0.0
      %369 = vmatpush1.msra.mxu0 1.0
      %370 = vmatprep.subr.mxu0 0.0
      %371 = vmatpush1.msra.mxu0 1.0
      %372 = vmatprep.subr.mxu0 0.0
      %373 = vmatpush1.msra.mxu0 1.0
      %374 = vmatprep.subr.mxu0 0.0
      %375 = vmatpush1.msra.mxu0 1.0
      %376 = vmatprep.subr.mxu0 0.0
      %377 = vmatpush1.msra.mxu0 1.0
      %378 = vmatprep.subr.mxu0 0.0
      %379 = vmatpush1.msra.mxu0 %v364
      %380 = vmatprep.subr.mxu0 0.0
      %381 = vmatpush1.msra.mxu0 0.0
      %382 = vmatprep.subr.mxu0 0.0
      %383 = vmatpush1.msra.mxu0 0.0
      %384 = vmatprep.subr.mxu0 0.0
      %385 = vmatpush1.msra.mxu0 0.0
      %386 = vmatprep.subr.mxu0 0.0
      %387 = vmatpush1.msra.mxu0 0.0
      %388 = vmatprep.subr.mxu0 0.0
      %389 = vmatpush1.msra.mxu0 0.0
      %390 = vmatprep.subr.mxu0 0.0
      %391 = vmatpush1.msra.mxu0 0.0
      %392 = vmatprep.subr.mxu0 0.0
      %393 = vmatpush1.msra.mxu0 0.0
      %394 = vmatprep.subr.mxu0 0.0
      %395 = vmatpush1.msra.mxu0 0.0
      %396 = vmatprep.subr.mxu0 0.0
      %397 = vmatpush1.msra.mxu0 0.0
      %398 = vmatprep.subr.mxu0 0.0
      %399 = vmatpush1.msra.mxu0 0.0
      %400 = vmatprep.subr.mxu0 0.0
      %401 = vmatpush1.msra.mxu0 0.0
      %402 = vmatprep.subr.mxu0 0.0
      %403 = vmatpush1.msra.mxu0 0.0
      %404 = vmatprep.subr.mxu0 0.0
      %405 = vmatpush1.msra.mxu0 0.0
      %406 = vmatprep.subr.mxu0 0.0
      %407 = vmatpush1.msra.mxu0 0.0
      %408 = vmatprep.subr.mxu0 0.0
      %409 = vmatpush1.msra.mxu0 0.0
      %410 = vmatprep.subr.mxu0 0.0
      %411 = vmatpush1.msra.mxu0 0.0
      %412 = vmatprep.subr.mxu0 0.0
      %413 = vmatpush1.msra.mxu0 0.0
      %414 = vmatprep.subr.mxu0 0.0
      %415 = vmatpush1.msra.mxu0 0.0
      %416 = vmatprep.subr.mxu0 0.0
      %417 = vmatpush1.msra.mxu0 0.0
      %418 = vmatprep.subr.mxu0 0.0
      %419 = vmatpush1.msra.mxu0 0.0
      %420 = vmatprep.subr.mxu0 0.0
      %421 = vmatpush1.msra.mxu0 0.0
      %422 = vmatprep.subr.mxu0 0.0
      %423 = vmatpush1.msra.mxu0 0.0
      %424 = vmatprep.subr.mxu0 0.0
      %425 = vmatpush1.msra.mxu0 0.0
      %426 = vmatprep.subr.mxu0 0.0
      %427 = vmatpush1.msra.mxu0 0.0
      %428 = vmatprep.subr.mxu0 0.0
      %429 = vmatpush1.msra.mxu0 0.0
      %430 = vmatprep.mubr.f32.mxu0 0.0
      %431 = vmatmul.mubr.f32.gmra.mrb[0].mxu0 %v219
      %v432 = vpop.f32.mrb[0].mxu0
      %v433 = vadd.f32 0.0, %v432
      %v434 = vpop.f32.mrb[0].mxu0
      %435 = vmatprep.mubr.f32.mxu0 0.0
      %436 = vmatmul.mubr.f32.gmra.mrb[0].mxu0 %v222
      %v437 = vpop.f32.mrb[0].mxu0
      %v438 = vadd.f32 0.0, %v437
      %v439 = vpop.f32.mrb[0].mxu0
      %440 = vmatprep.mubr.f32.mxu0 0.0
      %441 = vmatmul.mubr.f32.gmra.mrb[0].mxu0 %v225
      %v442 = vpop.f32.mrb[0].mxu0
      %v443 = vadd.f32 0.0, %v442
      %v444 = vpop.f32.mrb[0].mxu0
      %445 = vmatprep.mubr.f32.mxu0 0.0
      %446 = vmatmul.mubr.f32.gmra.mrb[0].mxu0 %v228
      %v447 = vpop.f32.mrb[0].mxu0
      %v448 = vadd.f32 0.0, %v447
      %v449 = vpop.f32.mrb[0].mxu0
      %450 = vmatprep.mubr.f32.mxu0 0.0
      %451 = vmatmul.mubr.f32.gmra.mrb[0].mxu0 %v231
      %v452 = vpop.f32.mrb[0].mxu0
      %v453 = vadd.f32 0.0, %v452
      %v454 = vpop.f32.mrb[0].mxu0
      %455 = vmatprep.mubr.f32.mxu0 0.0
      %456 = vmatmul.mubr.f32.gmra.mrb[0].mxu0 %v234
      %v457 = vpop.f32.mrb[0].mxu0
      %v458 = vadd.f32 0.0, %v457
      %v459 = vpop.f32.mrb[0].mxu0
      %460 = vmatprep.mubr.f32.mxu0 0.0
      %461 = vmatmul.mubr.f32.gmra.mrb[0].mxu0 %v237
      %v462 = vpop.f32.mrb[0].mxu0
      %v463 = vadd.f32 0.0, %v462
      %v464 = vpop.f32.mrb[0].mxu0
      %465 = vmatprep.mubr.f32.mxu0 0.0
      %466 = vmatmul.mubr.f32.gmra.mrb[0].mxu0 %v240
      %v467 = vpop.f32.mrb[0].mxu0
      %v468 = vadd.f32 0.0, %v467
      %v469 = vpop.f32.mrb[0].mxu0
      %470 = vmatprep.mubr.f32.mxu0 0.0
      %471 = vmatmul.mubr.f32.gmra.mrb[0].mxu0 %v243
      %v472 = vpop.f32.mrb[0].mxu0
      %v473 = vadd.f32 0.0, %v472
      %v474 = vpop.f32.mrb[0].mxu0
      %475 = vmatprep.mubr.f32.mxu0 0.0
      %476 = vmatmul.mubr.f32.gmra.mrb[0].mxu0 %v246
      %v477 = vpop.f32.mrb[0].mxu0
      %v478 = vadd.f32 0.0, %v477
      %v479 = vpop.f32.mrb[0].mxu0
      %480 = vmatprep.mubr.f32.mxu0 0.0
      %481 = vmatmul.mubr.f32.gmra.mrb[0].mxu0 %v249
      %v482 = vpop.f32.mrb[0].mxu0
      %v483 = vadd.f32 0.0, %v482
      %v484 = vpop.f32.mrb[0].mxu0
      %485 = vmatprep.mubr.f32.mxu0 0.0
      %486 = vmatmul.mubr.f32.gmra.mrb[0].mxu0 %v252
      %v487 = vpop.f32.mrb[0].mxu0
      %v488 = vadd.f32 0.0, %v487
      %v489 = vpop.f32.mrb[0].mxu0
      %490 = vmatprep.mubr.f32.mxu0 0.0
      %491 = vmatmul.mubr.f32.gmra.mrb[0].mxu0 %v255
      %v492 = vpop.f32.mrb[0].mxu0
      %v493 = vadd.f32 0.0, %v492
      %v494 = vpop.f32.mrb[0].mxu0
      %495 = vmatprep.mubr.f32.mxu0 0.0
      %496 = vmatmul.mubr.f32.gmra.mrb[0].mxu0 %v258
      %v497 = vpop.f32.mrb[0].mxu0
      %v498 = vadd.f32 0.0, %v497
      %v499 = vpop.f32.mrb[0].mxu0
      %500 = vmatprep.mubr.f32.mxu0 0.0
      %501 = vmatmul.mubr.f32.gmra.mrb[0].mxu0 %v261
      %v502 = vpop.f32.mrb[0].mxu0
      %v503 = vadd.f32 0.0, %v502
      %v504 = vpop.f32.mrb[0].mxu0
      %505 = vmatprep.mubr.f32.mxu0 0.0
      %506 = vmatmul.mubr.f32.gmra.mrb[0].mxu0 %v264
      %v507 = vpop.f32.mrb[0].mxu0
      %v508 = vadd.f32 0.0, %v507
      %v509 = vpop.f32.mrb[0].mxu0
      %510 = vmatprep.mubr.f32.mxu0 0.0
      %511 = vmatmul.mubr.f32.gmra.mrb[0].mxu0 %v267
      %v512 = vpop.f32.mrb[0].mxu0
      %v513 = vadd.f32 0.0, %v512
      %v514 = vpop.f32.mrb[0].mxu0
      %515 = vmatprep.mubr.f32.mxu0 0.0
      %516 = vmatmul.mubr.f32.gmra.mrb[0].mxu0 %v270
      %v517 = vpop.f32.mrb[0].mxu0
      %v518 = vadd.f32 0.0, %v517
      %v519 = vpop.f32.mrb[0].mxu0
      %520 = vmatprep.mubr.f32.mxu0 0.0
      %521 = vmatmul.mubr.f32.gmra.mrb[0].mxu0 %v273
      %v522 = vpop.f32.mrb[0].mxu0
      %v523 = vadd.f32 0.0, %v522
      %v524 = vpop.f32.mrb[0].mxu0
      %525 = vmatprep.mubr.f32.mxu0 0.0
      %526 = vmatmul.mubr.f32.gmra.mrb[0].mxu0 %v276
      %v527 = vpop.f32.mrb[0].mxu0
      %v528 = vadd.f32 0.0, %v527
      %v529 = vpop.f32.mrb[0].mxu0
      %530 = vmatprep.mubr.f32.mxu0 0.0
      %531 = vmatmul.mubr.f32.gmra.mrb[0].mxu0 %v279
      %v532 = vpop.f32.mrb[0].mxu0
      %v533 = vadd.f32 0.0, %v532
      %v534 = vpop.f32.mrb[0].mxu0
      %535 = vmatprep.mubr.f32.mxu0 0.0
      %536 = vmatmul.mubr.f32.gmra.mrb[0].mxu0 %v282
      %v537 = vpop.f32.mrb[0].mxu0
      %v538 = vadd.f32 0.0, %v537
      %v539 = vpop.f32.mrb[0].mxu0
      %540 = vmatprep.mubr.f32.mxu0 0.0
      %541 = vmatmul.mubr.f32.gmra.mrb[0].mxu0 %v285
      %v542 = vpop.f32.mrb[0].mxu0
      %v543 = vadd.f32 0.0, %v542
      %v544 = vpop.f32.mrb[0].mxu0
      %545 = vmatprep.mubr.f32.mxu0 0.0
      %546 = vmatmul.mubr.f32.gmra.mrb[0].mxu0 %v288
      %v547 = vpop.f32.mrb[0].mxu0
      %v548 = vadd.f32 0.0, %v547
      %v549 = vpop.f32.mrb[0].mxu0
      %550 = vmatprep.mubr.f32.mxu0 0.0
      %551 = vmatmul.mubr.f32.gmra.mrb[0].mxu0 %v291
      %v552 = vpop.f32.mrb[0].mxu0
      %v553 = vadd.f32 0.0, %v552
      %v554 = vpop.f32.mrb[0].mxu0
      %555 = vmatprep.mubr.f32.mxu0 0.0
      %556 = vmatmul.mubr.f32.gmra.mrb[0].mxu0 %v294
      %v557 = vpop.f32.mrb[0].mxu0
      %v558 = vadd.f32 0.0, %v557
      %v559 = vpop.f32.mrb[0].mxu0
      %560 = vmatprep.mubr.f32.mxu0 0.0
      %561 = vmatmul.mubr.f32.gmra.mrb[0].mxu0 %v297
      %v562 = vpop.f32.mrb[0].mxu0
      %v563 = vadd.f32 0.0, %v562
      %v564 = vpop.f32.mrb[0].mxu0
      %565 = vmatprep.mubr.f32.mxu0 0.0
      %566 = vmatmul.mubr.f32.gmra.mrb[0].mxu0 %v300
      %v567 = vpop.f32.mrb[0].mxu0
      %v568 = vadd.f32 0.0, %v567
      %v569 = vpop.f32.mrb[0].mxu0
      %570 = vmatprep.mubr.f32.mxu0 0.0
      %571 = vmatmul.mubr.f32.gmra.mrb[0].mxu0 %v303
      %v572 = vpop.f32.mrb[0].mxu0
      %v573 = vadd.f32 0.0, %v572
      %v574 = vpop.f32.mrb[0].mxu0
      %575 = vmatprep.mubr.f32.mxu0 0.0
      %576 = vmatmul.mubr.f32.gmra.mrb[0].mxu0 %v306
      %v577 = vpop.f32.mrb[0].mxu0
      %v578 = vadd.f32 0.0, %v577
      %v579 = vpop.f32.mrb[0].mxu0
      %580 = vmatprep.mubr.f32.mxu0 0.0
      %581 = vmatmul.mubr.f32.gmra.mrb[0].mxu0 %v309
      %v582 = vpop.f32.mrb[0].mxu0
      %v583 = vadd.f32 0.0, %v582
      %v584 = vpop.f32.mrb[0].mxu0
      %585 = vmatprep.mubr.f32.mxu0 0.0
      %586 = vmatmul.mubr.f32.gmra.mrb[0].mxu0 %v312
      %v587 = vpop.f32.mrb[0].mxu0
      %v588 = vadd.f32 0.0, %v587
      %v589 = vpop.f32.mrb[0].mxu0
      %590 = vmatprep.mubr.f32.mxu0 0.0
      %591 = vmatmul.mubr.f32.gmra.mrb[0].mxu0 %v315
      %v592 = vpop.f32.mrb[0].mxu0
      %v593 = vadd.f32 0.0, %v592
      %v594 = vpop.f32.mrb[0].mxu0
      %595 = vmatprep.mubr.f32.mxu0 0.0
      %596 = vmatmul.mubr.f32.gmra.mrb[0].mxu0 %v318
      %v597 = vpop.f32.mrb[0].mxu0
      %v598 = vadd.f32 0.0, %v597
      %v599 = vpop.f32.mrb[0].mxu0
      %600 = vmatprep.mubr.f32.mxu0 0.0
      %601 = vmatmul.mubr.f32.gmra.mrb[0].mxu0 %v321
      %v602 = vpop.f32.mrb[0].mxu0
      %v603 = vadd.f32 0.0, %v602
      %v604 = vpop.f32.mrb[0].mxu0
      %605 = vmatprep.mubr.f32.mxu0 0.0
      %606 = vmatmul.mubr.f32.gmra.mrb[0].mxu0 %v324
      %v607 = vpop.f32.mrb[0].mxu0
      %v608 = vadd.f32 0.0, %v607
      %v609 = vpop.f32.mrb[0].mxu0
      %610 = vmatprep.mubr.f32.mxu0 0.0
      %611 = vmatmul.mubr.f32.gmra.mrb[0].mxu0 %v327
      %v612 = vpop.f32.mrb[0].mxu0
      %v613 = vadd.f32 0.0, %v612
      %v614 = vpop.f32.mrb[0].mxu0
      %615 = vmatprep.mubr.f32.mxu0 0.0
      %616 = vmatmul.mubr.f32.gmra.mrb[0].mxu0 %v330
      %v617 = vpop.f32.mrb[0].mxu0
      %v618 = vadd.f32 0.0, %v617
      %v619 = vpop.f32.mrb[0].mxu0
      %620 = vmatprep.mubr.f32.mxu0 0.0
      %621 = vmatmul.mubr.f32.gmra.mrb[0].mxu0 %v333
      %v622 = vpop.f32.mrb[0].mxu0
      %v623 = vadd.f32 0.0, %v622
      %v624 = vpop.f32.mrb[0].mxu0
      %625 = vmatprep.mubr.f32.mxu0 0.0
      %626 = vmatmul.mubr.f32.gmra.mrb[0].mxu0 %v336
      %v627 = vpop.f32.mrb[0].mxu0
      %v628 = vadd.f32 0.0, %v627
      %v629 = vpop.f32.mrb[0].mxu0
      %630 = vmatprep.mubr.f32.mxu0 0.0
      %631 = vmatmul.mubr.f32.gmra.mrb[0].mxu0 %v339
      %v632 = vpop.f32.mrb[0].mxu0
      %v633 = vadd.f32 0.0, %v632
      %v634 = vpop.f32.mrb[0].mxu0
      %635 = vmatprep.mubr.f32.mxu0 0.0
      %636 = vmatmul.mubr.f32.gmra.mrb[0].mxu0 %v342
      %v637 = vpop.f32.mrb[0].mxu0
      %v638 = vadd.f32 0.0, %v637
      %v639 = vpop.f32.mrb[0].mxu0
      %640 = vmatprep.mubr.f32.mxu0 0.0
      %641 = vmatmul.mubr.f32.gmra.mrb[0].mxu0 %v345
      %v642 = vpop.f32.mrb[0].mxu0
      %v643 = vadd.f32 0.0, %v642
      %v644 = vpop.f32.mrb[0].mxu0
      %645 = vmatprep.mubr.f32.mxu0 0.0
      %646 = vmatmul.mubr.f32.gmra.mrb[0].mxu0 %v348
      %v647 = vpop.f32.mrb[0].mxu0
      %v648 = vadd.f32 0.0, %v647
      %v649 = vpop.f32.mrb[0].mxu0
      %650 = vmatprep.mubr.f32.mxu0 0.0
      %651 = vmatmul.mubr.f32.gmra.mrb[0].mxu0 %v351
      %v652 = vpop.f32.mrb[0].mxu0
      %v653 = vadd.f32 0.0, %v652
      %v654 = vpop.f32.mrb[0].mxu0
      %655 = vmatprep.mubr.f32.mxu0 0.0
      %656 = vmatmul.mubr.f32.gmra.mrb[0].mxu0 %v354
      %v657 = vpop.f32.mrb[0].mxu0
      %v658 = vadd.f32 0.0, %v657
      %v659 = vpop.f32.mrb[0].mxu0
      %660 = vmatprep.mubr.f32.mxu0 0.0
      %661 = vmatmul.mubr.f32.gmra.mrb[0].mxu0 %v357
      %v662 = vpop.f32.mrb[0].mxu0
      %v663 = vadd.f32 0.0, %v662
      %v664 = vpop.f32.mrb[0].mxu0
      %665 = vmatprep.mubr.f32.mxu0 0.0
      %666 = vmatmul.mubr.f32.gmra.mrb[0].mxu0 %v360
      %v667 = vpop.f32.mrb[0].mxu0
      %v668 = vadd.f32 0.0, %v667
      %v669 = vpop.f32.mrb[0].mxu0
      %670 = vdwg.mxu0
      %v671 = vmul.f32 %v169, %v169
      %v672 = vmul.f32 %v170, %v170
      %v673 = vmul.f32 %v171, %v171
      %v674 = vmul.f32 %v172, %v172
      %v675 = vmul.f32 %v173, %v173
      %v676 = vmul.f32 %v174, %v174
      %v677 = vmul.f32 %v175, %v175
      %v678 = vmul.f32 %v176, %v176
      %v679 = vmul.f32 %v177, %v177
      %v680 = vmul.f32 %v178, %v178
      %v681 = vmul.f32 %v179, %v179
      %v682 = vmul.f32 %v180, %v180
      %v683 = vmul.f32 %v181, %v181
      %v684 = vmul.f32 %v182, %v182
      %v685 = vmul.f32 %v183, %v183
      %v686 = vmul.f32 %v184, %v184
      %v687 = vmul.f32 %v185, %v185
      %v688 = vmul.f32 %v186, %v186
      %v689 = vmul.f32 %v187, %v187
      %v690 = vmul.f32 %v188, %v188
      %v691 = vmul.f32 %v189, %v189
      %v692 = vmul.f32 %v190, %v190
      %v693 = vmul.f32 %v191, %v191
      %v694 = vmul.f32 %v192, %v192
      %v695 = vmul.f32 %v193, %v193
      %v696 = vmul.f32 %v194, %v194
      %v697 = vmul.f32 %v195, %v195
      %v698 = vmul.f32 %v196, %v196
      %v699 = vmul.f32 %v197, %v197
      %v700 = vmul.f32 %v198, %v198
      %v701 = vmul.f32 %v199, %v199
      %v702 = vmul.f32 %v200, %v200
      %v703 = vmul.f32 %v201, %v201
      %v704 = vmul.f32 %v202, %v202
      %v705 = vmul.f32 %v203, %v203
      %v706 = vmul.f32 %v204, %v204
      %v707 = vmul.f32 %v205, %v205
      %v708 = vmul.f32 %v206, %v206
      %v709 = vmul.f32 %v207, %v207
      %v710 = vmul.f32 %v208, %v208
      %v711 = vmul.f32 %v209, %v209
      %v712 = vmul.f32 %v210, %v210
      %v713 = vmul.f32 %v211, %v211
      %v714 = vmul.f32 %v212, %v212
      %v715 = vmul.f32 %v213, %v213
      %v716 = vmul.f32 %v214, %v214
      %v717 = vmul.f32 %v215, %v215
      %v718 = vmul.f32 %v216, %v216
      %v720 = vsel %vm217, %v671, 0
      %v723 = vsel %vm217, %v672, 0
      %v726 = vsel %vm217, %v673, 0
      %v729 = vsel %vm217, %v674, 0
      %v732 = vsel %vm217, %v675, 0
      %v735 = vsel %vm217, %v676, 0
      %v738 = vsel %vm217, %v677, 0
      %v741 = vsel %vm217, %v678, 0
      %v744 = vsel %vm217, %v679, 0
      %v747 = vsel %vm217, %v680, 0
      %v750 = vsel %vm217, %v681, 0
      %v753 = vsel %vm217, %v682, 0
      %v756 = vsel %vm217, %v683, 0
      %v759 = vsel %vm217, %v684, 0
      %v762 = vsel %vm217, %v685, 0
      %v765 = vsel %vm217, %v686, 0
      %v768 = vsel %vm217, %v687, 0
      %v771 = vsel %vm217, %v688, 0
      %v774 = vsel %vm217, %v689, 0
      %v777 = vsel %vm217, %v690, 0
      %v780 = vsel %vm217, %v691, 0
      %v783 = vsel %vm217, %v692, 0
      %v786 = vsel %vm217, %v693, 0
      %v789 = vsel %vm217, %v694, 0
      %v792 = vsel %vm217, %v695, 0
      %v795 = vsel %vm217, %v696, 0
      %v798 = vsel %vm217, %v697, 0
      %v801 = vsel %vm217, %v698, 0
      %v804 = vsel %vm217, %v699, 0
      %v807 = vsel %vm217, %v700, 0
      %v810 = vsel %vm217, %v701, 0
      %v813 = vsel %vm217, %v702, 0
      %v816 = vsel %vm217, %v703, 0
      %v819 = vsel %vm217, %v704, 0
      %v822 = vsel %vm217, %v705, 0
      %v825 = vsel %vm217, %v706, 0
      %v828 = vsel %vm217, %v707, 0
      %v831 = vsel %vm217, %v708, 0
      %v834 = vsel %vm217, %v709, 0
      %v837 = vsel %vm217, %v710, 0
      %v840 = vsel %vm217, %v711, 0
      %v843 = vsel %vm217, %v712, 0
      %v846 = vsel %vm217, %v713, 0
      %v849 = vsel %vm217, %v714, 0
      %v852 = vsel %vm217, %v715, 0
      %v855 = vsel %vm217, %v716, 0
      %v858 = vsel %vm217, %v717, 0
      %v861 = vsel %vm217, %v718, 0
      %863 = vmatprep.subr.mxu0 0.0
      %864 = vmatpush1.msra.mxu0 1.0
      %865 = vmatprep.subr.mxu0 0.0
      %866 = vmatpush1.msra.mxu0 1.0
      %867 = vmatprep.subr.mxu0 0.0
      %868 = vmatpush1.msra.mxu0 1.0
      %869 = vmatprep.subr.mxu0 0.0
      %870 = vmatpush1.msra.mxu0 1.0
      %871 = vmatprep.subr.mxu0 0.0
      %872 = vmatpush1.msra.mxu0 1.0
      %873 = vmatprep.subr.mxu0 0.0
      %874 = vmatpush1.msra.mxu0 1.0
      %875 = vmatprep.subr.mxu0 0.0
      %876 = vmatpush1.msra.mxu0 %v364
      %877 = vmatprep.subr.mxu0 0.0
      %878 = vmatpush1.msra.mxu0 0.0
      %879 = vmatprep.subr.mxu0 0.0
      %880 = vmatpush1.msra.mxu0 0.0
      %881 = vmatprep.subr.mxu0 0.0
      %882 = vmatpush1.msra.mxu0 0.0
      %883 = vmatprep.subr.mxu0 0.0
      %884 = vmatpush1.msra.mxu0 0.0
      %885 = vmatprep.subr.mxu0 0.0
      %886 = vmatpush1.msra.mxu0 0.0
      %887 = vmatprep.subr.mxu0 0.0
      %888 = vmatpush1.msra.mxu0 0.0
      %889 = vmatprep.subr.mxu0 0.0
      %890 = vmatpush1.msra.mxu0 0.0
      %891 = vmatprep.subr.mxu0 0.0
      %892 = vmatpush1.msra.mxu0 0.0
      %893 = vmatprep.subr.mxu0 0.0
      %894 = vmatpush1.msra.mxu0 0.0
      %895 = vmatprep.subr.mxu0 0.0
      %896 = vmatpush1.msra.mxu0 0.0
      %897 = vmatprep.subr.mxu0 0.0
      %898 = vmatpush1.msra.mxu0 0.0
      %899 = vmatprep.subr.mxu0 0.0
      %900 = vmatpush1.msra.mxu0 0.0
      %901 = vmatprep.subr.mxu0 0.0
      %902 = vmatpush1.msra.mxu0 0.0
      %903 = vmatprep.subr.mxu0 0.0
      %904 = vmatpush1.msra.mxu0 0.0
      %905 = vmatprep.subr.mxu0 0.0
      %906 = vmatpush1.msra.mxu0 0.0
      %907 = vmatprep.subr.mxu0 0.0
      %908 = vmatpush1.msra.mxu0 0.0
      %909 = vmatprep.subr.mxu0 0.0
      %910 = vmatpush1.msra.mxu0 0.0
      %911 = vmatprep.subr.mxu0 0.0
      %912 = vmatpush1.msra.mxu0 0.0
      %913 = vmatprep.subr.mxu0 0.0
      %914 = vmatpush1.msra.mxu0 0.0
      %915 = vmatprep.subr.mxu0 0.0
      %916 = vmatpush1.msra.mxu0 0.0
      %917 = vmatprep.subr.mxu0 0.0
      %918 = vmatpush1.msra.mxu0 0.0
      %919 = vmatprep.subr.mxu0 0.0
      %920 = vmatpush1.msra.mxu0 0.0
      %921 = vmatprep.subr.mxu0 0.0
      %922 = vmatpush1.msra.mxu0 0.0
      %923 = vmatprep.subr.mxu0 0.0
      %924 = vmatpush1.msra.mxu0 0.0
      %925 = vmatprep.subr.mxu0 0.0
      %926 = vmatpush1.msra.mxu0 0.0
      %927 = vmatprep.mubr.f32.mxu0 0.0
      %928 = vmatmul.mubr.f32.gmra.mrb[0].mxu0 %v720
      %v929 = vpop.f32.mrb[0].mxu0
      %v930 = vadd.f32 0.0, %v929
      %v931 = vpop.f32.mrb[0].mxu0
      %932 = vmatprep.mubr.f32.mxu0 0.0
      %933 = vmatmul.mubr.f32.gmra.mrb[0].mxu0 %v723
      %v934 = vpop.f32.mrb[0].mxu0
      %v935 = vadd.f32 0.0, %v934
      %v936 = vpop.f32.mrb[0].mxu0
      %937 = vmatprep.mubr.f32.mxu0 0.0
      %938 = vmatmul.mubr.f32.gmra.mrb[0].mxu0 %v726
      %v939 = vpop.f32.mrb[0].mxu0
      %v940 = vadd.f32 0.0, %v939
      %v941 = vpop.f32.mrb[0].mxu0
      %942 = vmatprep.mubr.f32.mxu0 0.0
      %943 = vmatmul.mubr.f32.gmra.mrb[0].mxu0 %v729
      %v944 = vpop.f32.mrb[0].mxu0
      %v945 = vadd.f32 0.0, %v944
      %v946 = vpop.f32.mrb[0].mxu0
      %947 = vmatprep.mubr.f32.mxu0 0.0
      %948 = vmatmul.mubr.f32.gmra.mrb[0].mxu0 %v732
      %v949 = vpop.f32.mrb[0].mxu0
      %v950 = vadd.f32 0.0, %v949
      %v951 = vpop.f32.mrb[0].mxu0
      %952 = vmatprep.mubr.f32.mxu0 0.0
      %953 = vmatmul.mubr.f32.gmra.mrb[0].mxu0 %v735
      %v954 = vpop.f32.mrb[0].mxu0
      %v955 = vadd.f32 0.0, %v954
      %v956 = vpop.f32.mrb[0].mxu0
      %957 = vmatprep.mubr.f32.mxu0 0.0
      %958 = vmatmul.mubr.f32.gmra.mrb[0].mxu0 %v738
      %v959 = vpop.f32.mrb[0].mxu0
      %v960 = vadd.f32 0.0, %v959
      %v961 = vpop.f32.mrb[0].mxu0
      %962 = vmatprep.mubr.f32.mxu0 0.0
      %963 = vmatmul.mubr.f32.gmra.mrb[0].mxu0 %v741
      %v964 = vpop.f32.mrb[0].mxu0
      %v965 = vadd.f32 0.0, %v964
      %v966 = vpop.f32.mrb[0].mxu0
      %967 = vmatprep.mubr.f32.mxu0 0.0
      %968 = vmatmul.mubr.f32.gmra.mrb[0].mxu0 %v744
      %v969 = vpop.f32.mrb[0].mxu0
      %v970 = vadd.f32 0.0, %v969
      %v971 = vpop.f32.mrb[0].mxu0
      %972 = vmatprep.mubr.f32.mxu0 0.0
      %973 = vmatmul.mubr.f32.gmra.mrb[0].mxu0 %v747
      %v974 = vpop.f32.mrb[0].mxu0
      %v975 = vadd.f32 0.0, %v974
      %v976 = vpop.f32.mrb[0].mxu0
      %977 = vmatprep.mubr.f32.mxu0 0.0
      %978 = vmatmul.mubr.f32.gmra.mrb[0].mxu0 %v750
      %v979 = vpop.f32.mrb[0].mxu0
      %v980 = vadd.f32 0.0, %v979
      %v981 = vpop.f32.mrb[0].mxu0
      %982 = vmatprep.mubr.f32.mxu0 0.0
      %983 = vmatmul.mubr.f32.gmra.mrb[0].mxu0 %v753
      %v984 = vpop.f32.mrb[0].mxu0
      %v985 = vadd.f32 0.0, %v984
      %v986 = vpop.f32.mrb[0].mxu0
      %987 = vmatprep.mubr.f32.mxu0 0.0
      %988 = vmatmul.mubr.f32.gmra.mrb[0].mxu0 %v756
      %v989 = vpop.f32.mrb[0].mxu0
      %v990 = vadd.f32 0.0, %v989
      %v991 = vpop.f32.mrb[0].mxu0
      %992 = vmatprep.mubr.f32.mxu0 0.0
      %993 = vmatmul.mubr.f32.gmra.mrb[0].mxu0 %v759
      %v994 = vpop.f32.mrb[0].mxu0
      %v995 = vadd.f32 0.0, %v994
      %v996 = vpop.f32.mrb[0].mxu0
      %997 = vmatprep.mubr.f32.mxu0 0.0
      %998 = vmatmul.mubr.f32.gmra.mrb[0].mxu0 %v762
      %v999 = vpop.f32.mrb[0].mxu0
      %v1000 = vadd.f32 0.0, %v999
      %v1001 = vpop.f32.mrb[0].mxu0
      %1002 = vmatprep.mubr.f32.mxu0 0.0
      %1003 = vmatmul.mubr.f32.gmra.mrb[0].mxu0 %v765
      %v1004 = vpop.f32.mrb[0].mxu0
      %v1005 = vadd.f32 0.0, %v1004
      %v1006 = vpop.f32.mrb[0].mxu0
      %1007 = vmatprep.mubr.f32.mxu0 0.0
      %1008 = vmatmul.mubr.f32.gmra.mrb[0].mxu0 %v768
      %v1009 = vpop.f32.mrb[0].mxu0
      %v1010 = vadd.f32 0.0, %v1009
      %v1011 = vpop.f32.mrb[0].mxu0
      %1012 = vmatprep.mubr.f32.mxu0 0.0
      %1013 = vmatmul.mubr.f32.gmra.mrb[0].mxu0 %v771
      %v1014 = vpop.f32.mrb[0].mxu0
      %v1015 = vadd.f32 0.0, %v1014
      %v1016 = vpop.f32.mrb[0].mxu0
      %1017 = vmatprep.mubr.f32.mxu0 0.0
      %1018 = vmatmul.mubr.f32.gmra.mrb[0].mxu0 %v774
      %v1019 = vpop.f32.mrb[0].mxu0
      %v1020 = vadd.f32 0.0, %v1019
      %v1021 = vpop.f32.mrb[0].mxu0
      %1022 = vmatprep.mubr.f32.mxu0 0.0
      %1023 = vmatmul.mubr.f32.gmra.mrb[0].mxu0 %v777
      %v1024 = vpop.f32.mrb[0].mxu0
      %v1025 = vadd.f32 0.0, %v1024
      %v1026 = vpop.f32.mrb[0].mxu0
      %1027 = vmatprep.mubr.f32.mxu0 0.0
      %1028 = vmatmul.mubr.f32.gmra.mrb[0].mxu0 %v780
      %v1029 = vpop.f32.mrb[0].mxu0
      %v1030 = vadd.f32 0.0, %v1029
      %v1031 = vpop.f32.mrb[0].mxu0
      %1032 = vmatprep.mubr.f32.mxu0 0.0
      %1033 = vmatmul.mubr.f32.gmra.mrb[0].mxu0 %v783
      %v1034 = vpop.f32.mrb[0].mxu0
      %v1035 = vadd.f32 0.0, %v1034
      %v1036 = vpop.f32.mrb[0].mxu0
      %1037 = vmatprep.mubr.f32.mxu0 0.0
      %1038 = vmatmul.mubr.f32.gmra.mrb[0].mxu0 %v786
      %v1039 = vpop.f32.mrb[0].mxu0
      %v1040 = vadd.f32 0.0, %v1039
      %v1041 = vpop.f32.mrb[0].mxu0
      %1042 = vmatprep.mubr.f32.mxu0 0.0
      %1043 = vmatmul.mubr.f32.gmra.mrb[0].mxu0 %v789
      %v1044 = vpop.f32.mrb[0].mxu0
      %v1045 = vadd.f32 0.0, %v1044
      %v1046 = vpop.f32.mrb[0].mxu0
      %1047 = vmatprep.mubr.f32.mxu0 0.0
      %1048 = vmatmul.mubr.f32.gmra.mrb[0].mxu0 %v792
      %v1049 = vpop.f32.mrb[0].mxu0
      %v1050 = vadd.f32 0.0, %v1049
      %v1051 = vpop.f32.mrb[0].mxu0
      %1052 = vmatprep.mubr.f32.mxu0 0.0
      %1053 = vmatmul.mubr.f32.gmra.mrb[0].mxu0 %v795
      %v1054 = vpop.f32.mrb[0].mxu0
      %v1055 = vadd.f32 0.0, %v1054
      %v1056 = vpop.f32.mrb[0].mxu0
      %1057 = vmatprep.mubr.f32.mxu0 0.0
      %1058 = vmatmul.mubr.f32.gmra.mrb[0].mxu0 %v798
      %v1059 = vpop.f32.mrb[0].mxu0
      %v1060 = vadd.f32 0.0, %v1059
      %v1061 = vpop.f32.mrb[0].mxu0
      %1062 = vmatprep.mubr.f32.mxu0 0.0
      %1063 = vmatmul.mubr.f32.gmra.mrb[0].mxu0 %v801
      %v1064 = vpop.f32.mrb[0].mxu0
      %v1065 = vadd.f32 0.0, %v1064
      %v1066 = vpop.f32.mrb[0].mxu0
      %1067 = vmatprep.mubr.f32.mxu0 0.0
      %1068 = vmatmul.mubr.f32.gmra.mrb[0].mxu0 %v804
      %v1069 = vpop.f32.mrb[0].mxu0
      %v1070 = vadd.f32 0.0, %v1069
      %v1071 = vpop.f32.mrb[0].mxu0
      %1072 = vmatprep.mubr.f32.mxu0 0.0
      %1073 = vmatmul.mubr.f32.gmra.mrb[0].mxu0 %v807
      %v1074 = vpop.f32.mrb[0].mxu0
      %v1075 = vadd.f32 0.0, %v1074
      %v1076 = vpop.f32.mrb[0].mxu0
      %1077 = vmatprep.mubr.f32.mxu0 0.0
      %1078 = vmatmul.mubr.f32.gmra.mrb[0].mxu0 %v810
      %v1079 = vpop.f32.mrb[0].mxu0
      %v1080 = vadd.f32 0.0, %v1079
      %v1081 = vpop.f32.mrb[0].mxu0
      %1082 = vmatprep.mubr.f32.mxu0 0.0
      %1083 = vmatmul.mubr.f32.gmra.mrb[0].mxu0 %v813
      %v1084 = vpop.f32.mrb[0].mxu0
      %v1085 = vadd.f32 0.0, %v1084
      %v1086 = vpop.f32.mrb[0].mxu0
      %1087 = vmatprep.mubr.f32.mxu0 0.0
      %1088 = vmatmul.mubr.f32.gmra.mrb[0].mxu0 %v816
      %v1089 = vpop.f32.mrb[0].mxu0
      %v1090 = vadd.f32 0.0, %v1089
      %v1091 = vpop.f32.mrb[0].mxu0
      %1092 = vmatprep.mubr.f32.mxu0 0.0
      %1093 = vmatmul.mubr.f32.gmra.mrb[0].mxu0 %v819
      %v1094 = vpop.f32.mrb[0].mxu0
      %v1095 = vadd.f32 0.0, %v1094
      %v1096 = vpop.f32.mrb[0].mxu0
      %1097 = vmatprep.mubr.f32.mxu0 0.0
      %1098 = vmatmul.mubr.f32.gmra.mrb[0].mxu0 %v822
      %v1099 = vpop.f32.mrb[0].mxu0
      %v1100 = vadd.f32 0.0, %v1099
      %v1101 = vpop.f32.mrb[0].mxu0
      %1102 = vmatprep.mubr.f32.mxu0 0.0
      %1103 = vmatmul.mubr.f32.gmra.mrb[0].mxu0 %v825
      %v1104 = vpop.f32.mrb[0].mxu0
      %v1105 = vadd.f32 0.0, %v1104
      %v1106 = vpop.f32.mrb[0].mxu0
      %1107 = vmatprep.mubr.f32.mxu0 0.0
      %1108 = vmatmul.mubr.f32.gmra.mrb[0].mxu0 %v828
      %v1109 = vpop.f32.mrb[0].mxu0
      %v1110 = vadd.f32 0.0, %v1109
      %v1111 = vpop.f32.mrb[0].mxu0
      %1112 = vmatprep.mubr.f32.mxu0 0.0
      %1113 = vmatmul.mubr.f32.gmra.mrb[0].mxu0 %v831
      %v1114 = vpop.f32.mrb[0].mxu0
      %v1115 = vadd.f32 0.0, %v1114
      %v1116 = vpop.f32.mrb[0].mxu0
      %1117 = vmatprep.mubr.f32.mxu0 0.0
      %1118 = vmatmul.mubr.f32.gmra.mrb[0].mxu0 %v834
      %v1119 = vpop.f32.mrb[0].mxu0
      %v1120 = vadd.f32 0.0, %v1119
      %v1121 = vpop.f32.mrb[0].mxu0
      %1122 = vmatprep.mubr.f32.mxu0 0.0
      %1123 = vmatmul.mubr.f32.gmra.mrb[0].mxu0 %v837
      %v1124 = vpop.f32.mrb[0].mxu0
      %v1125 = vadd.f32 0.0, %v1124
      %v1126 = vpop.f32.mrb[0].mxu0
      %1127 = vmatprep.mubr.f32.mxu0 0.0
      %1128 = vmatmul.mubr.f32.gmra.mrb[0].mxu0 %v840
      %v1129 = vpop.f32.mrb[0].mxu0
      %v1130 = vadd.f32 0.0, %v1129
      %v1131 = vpop.f32.mrb[0].mxu0
      %1132 = vmatprep.mubr.f32.mxu0 0.0
      %1133 = vmatmul.mubr.f32.gmra.mrb[0].mxu0 %v843
      %v1134 = vpop.f32.mrb[0].mxu0
      %v1135 = vadd.f32 0.0, %v1134
      %v1136 = vpop.f32.mrb[0].mxu0
      %1137 = vmatprep.mubr.f32.mxu0 0.0
      %1138 = vmatmul.mubr.f32.gmra.mrb[0].mxu0 %v846
      %v1139 = vpop.f32.mrb[0].mxu0
      %v1140 = vadd.f32 0.0, %v1139
      %v1141 = vpop.f32.mrb[0].mxu0
      %1142 = vmatprep.mubr.f32.mxu0 0.0
      %1143 = vmatmul.mubr.f32.gmra.mrb[0].mxu0 %v849
      %v1144 = vpop.f32.mrb[0].mxu0
      %v1145 = vadd.f32 0.0, %v1144
      %v1146 = vpop.f32.mrb[0].mxu0
      %1147 = vmatprep.mubr.f32.mxu0 0.0
      %1148 = vmatmul.mubr.f32.gmra.mrb[0].mxu0 %v852
      %v1149 = vpop.f32.mrb[0].mxu0
      %v1150 = vadd.f32 0.0, %v1149
      %v1151 = vpop.f32.mrb[0].mxu0
      %1152 = vmatprep.mubr.f32.mxu0 0.0
      %1153 = vmatmul.mubr.f32.gmra.mrb[0].mxu0 %v855
      %v1154 = vpop.f32.mrb[0].mxu0
      %v1155 = vadd.f32 0.0, %v1154
      %v1156 = vpop.f32.mrb[0].mxu0
      %1157 = vmatprep.mubr.f32.mxu0 0.0
      %1158 = vmatmul.mubr.f32.gmra.mrb[0].mxu0 %v858
      %v1159 = vpop.f32.mrb[0].mxu0
      %v1160 = vadd.f32 0.0, %v1159
      %v1161 = vpop.f32.mrb[0].mxu0
      %1162 = vmatprep.mubr.f32.mxu0 0.0
      %1163 = vmatmul.mubr.f32.gmra.mrb[0].mxu0 %v861
      %v1164 = vpop.f32.mrb[0].mxu0
      %v1165 = vadd.f32 0.0, %v1164
      %v1166 = vpop.f32.mrb[0].mxu0
      %1167 = vdwg.mxu0
      %v1168 = vmul.f32 %v433, 0.020408163
      %v1169 = vmul.f32 %v438, 0.020408163
      %v1170 = vmul.f32 %v443, 0.020408163
      %v1171 = vmul.f32 %v448, 0.020408163
      %v1172 = vmul.f32 %v453, 0.020408163
      %v1173 = vmul.f32 %v458, 0.020408163
      %v1174 = vmul.f32 %v463, 0.020408163
      %v1175 = vmul.f32 %v468, 0.020408163
      %v1176 = vmul.f32 %v473, 0.020408163
      %v1177 = vmul.f32 %v478, 0.020408163
      %v1178 = vmul.f32 %v483, 0.020408163
      %v1179 = vmul.f32 %v488, 0.020408163
      %v1180 = vmul.f32 %v493, 0.020408163
      %v1181 = vmul.f32 %v498, 0.020408163
      %v1182 = vmul.f32 %v503, 0.020408163
      %v1183 = vmul.f32 %v508, 0.020408163
      %v1184 = vmul.f32 %v513, 0.020408163
      %v1185 = vmul.f32 %v518, 0.020408163
      %v1186 = vmul.f32 %v523, 0.020408163
      %v1187 = vmul.f32 %v528, 0.020408163
      %v1188 = vmul.f32 %v533, 0.020408163
      %v1189 = vmul.f32 %v538, 0.020408163
      %v1190 = vmul.f32 %v543, 0.020408163
      %v1191 = vmul.f32 %v548, 0.020408163
      %v1192 = vmul.f32 %v553, 0.020408163
      %v1193 = vmul.f32 %v558, 0.020408163
      %v1194 = vmul.f32 %v563, 0.020408163
      %v1195 = vmul.f32 %v568, 0.020408163
      %v1196 = vmul.f32 %v573, 0.020408163
      %v1197 = vmul.f32 %v578, 0.020408163
      %v1198 = vmul.f32 %v583, 0.020408163
      %v1199 = vmul.f32 %v588, 0.020408163
      %v1200 = vmul.f32 %v593, 0.020408163
      %v1201 = vmul.f32 %v598, 0.020408163
      %v1202 = vmul.f32 %v603, 0.020408163
      %v1203 = vmul.f32 %v608, 0.020408163
      %v1204 = vmul.f32 %v613, 0.020408163
      %v1205 = vmul.f32 %v618, 0.020408163
      %v1206 = vmul.f32 %v623, 0.020408163
      %v1207 = vmul.f32 %v628, 0.020408163
      %v1208 = vmul.f32 %v633, 0.020408163
      %v1209 = vmul.f32 %v638, 0.020408163
      %v1210 = vmul.f32 %v643, 0.020408163
      %v1211 = vmul.f32 %v648, 0.020408163
      %v1212 = vmul.f32 %v653, 0.020408163
      %v1213 = vmul.f32 %v658, 0.020408163
      %v1214 = vmul.f32 %v663, 0.020408163
      %v1215 = vmul.f32 %v668, 0.020408163
      %v1216 = vmul.f32 %v930, 0.020408163
      %v1217 = vmul.f32 %v935, 0.020408163
      %v1218 = vmul.f32 %v940, 0.020408163
      %v1219 = vmul.f32 %v945, 0.020408163
      %v1220 = vmul.f32 %v950, 0.020408163
      %v1221 = vmul.f32 %v955, 0.020408163
      %v1222 = vmul.f32 %v960, 0.020408163
      %v1223 = vmul.f32 %v965, 0.020408163
      %v1224 = vmul.f32 %v970, 0.020408163
      %v1225 = vmul.f32 %v975, 0.020408163
      %v1226 = vmul.f32 %v980, 0.020408163
      %v1227 = vmul.f32 %v985, 0.020408163
      %v1228 = vmul.f32 %v990, 0.020408163
      %v1229 = vmul.f32 %v995, 0.020408163
      %v1230 = vmul.f32 %v1000, 0.020408163
      %v1231 = vmul.f32 %v1005, 0.020408163
      %v1232 = vmul.f32 %v1010, 0.020408163
      %v1233 = vmul.f32 %v1015, 0.020408163
      %v1234 = vmul.f32 %v1020, 0.020408163
      %v1235 = vmul.f32 %v1025, 0.020408163
      %v1236 = vmul.f32 %v1030, 0.020408163
      %v1237 = vmul.f32 %v1035, 0.020408163
      %v1238 = vmul.f32 %v1040, 0.020408163
      %v1239 = vmul.f32 %v1045, 0.020408163
      %v1240 = vmul.f32 %v1050, 0.020408163
      %v1241 = vmul.f32 %v1055, 0.020408163
      %v1242 = vmul.f32 %v1060, 0.020408163
      %v1243 = vmul.f32 %v1065, 0.020408163
      %v1244 = vmul.f32 %v1070, 0.020408163
      %v1245 = vmul.f32 %v1075, 0.020408163
      %v1246 = vmul.f32 %v1080, 0.020408163
      %v1247 = vmul.f32 %v1085, 0.020408163
      %v1248 = vmul.f32 %v1090, 0.020408163
      %v1249 = vmul.f32 %v1095, 0.020408163
      %v1250 = vmul.f32 %v1100, 0.020408163
      %v1251 = vmul.f32 %v1105, 0.020408163
      %v1252 = vmul.f32 %v1110, 0.020408163
      %v1253 = vmul.f32 %v1115, 0.020408163
      %v1254 = vmul.f32 %v1120, 0.020408163
      %v1255 = vmul.f32 %v1125, 0.020408163
      %v1256 = vmul.f32 %v1130, 0.020408163
      %v1257 = vmul.f32 %v1135, 0.020408163
      %v1258 = vmul.f32 %v1140, 0.020408163
      %v1259 = vmul.f32 %v1145, 0.020408163
      %v1260 = vmul.f32 %v1150, 0.020408163
      %v1261 = vmul.f32 %v1155, 0.020408163
      %v1262 = vmul.f32 %v1160, 0.020408163
      %v1263 = vmul.f32 %v1165, 0.020408163
      %v1264 = vmul.f32 %v1168, %v1168
      %v1265 = vmul.f32 %v1169, %v1169
      %v1266 = vmul.f32 %v1170, %v1170
      %v1267 = vmul.f32 %v1171, %v1171
      %v1268 = vmul.f32 %v1172, %v1172
      %v1269 = vmul.f32 %v1173, %v1173
      %v1270 = vmul.f32 %v1174, %v1174
      %v1271 = vmul.f32 %v1175, %v1175
      %v1272 = vmul.f32 %v1176, %v1176
      %v1273 = vmul.f32 %v1177, %v1177
      %v1274 = vmul.f32 %v1178, %v1178
      %v1275 = vmul.f32 %v1179, %v1179
      %v1276 = vmul.f32 %v1180, %v1180
      %v1277 = vmul.f32 %v1181, %v1181
      %v1278 = vmul.f32 %v1182, %v1182
      %v1279 = vmul.f32 %v1183, %v1183
      %v1280 = vmul.f32 %v1184, %v1184
      %v1281 = vmul.f32 %v1185, %v1185
      %v1282 = vmul.f32 %v1186, %v1186
      %v1283 = vmul.f32 %v1187, %v1187
      %v1284 = vmul.f32 %v1188, %v1188
      %v1285 = vmul.f32 %v1189, %v1189
      %v1286 = vmul.f32 %v1190, %v1190
      %v1287 = vmul.f32 %v1191, %v1191
      %v1288 = vmul.f32 %v1192, %v1192
      %v1289 = vmul.f32 %v1193, %v1193
      %v1290 = vmul.f32 %v1194, %v1194
      %v1291 = vmul.f32 %v1195, %v1195
      %v1292 = vmul.f32 %v1196, %v1196
      %v1293 = vmul.f32 %v1197, %v1197
      %v1294 = vmul.f32 %v1198, %v1198
      %v1295 = vmul.f32 %v1199, %v1199
      %v1296 = vmul.f32 %v1200, %v1200
      %v1297 = vmul.f32 %v1201, %v1201
      %v1298 = vmul.f32 %v1202, %v1202
      %v1299 = vmul.f32 %v1203, %v1203
      %v1300 = vmul.f32 %v1204, %v1204
      %v1301 = vmul.f32 %v1205, %v1205
      %v1302 = vmul.f32 %v1206, %v1206
      %v1303 = vmul.f32 %v1207, %v1207
      %v1304 = vmul.f32 %v1208, %v1208
      %v1305 = vmul.f32 %v1209, %v1209
      %v1306 = vmul.f32 %v1210, %v1210
      %v1307 = vmul.f32 %v1211, %v1211
      %v1308 = vmul.f32 %v1212, %v1212
      %v1309 = vmul.f32 %v1213, %v1213
      %v1310 = vmul.f32 %v1214, %v1214
      %v1311 = vmul.f32 %v1215, %v1215
      %v1312 = vsub.f32 %v1216, %v1264
      %v1313 = vsub.f32 %v1217, %v1265
      %v1314 = vsub.f32 %v1218, %v1266
      %v1315 = vsub.f32 %v1219, %v1267
      %v1316 = vsub.f32 %v1220, %v1268
      %v1317 = vsub.f32 %v1221, %v1269
      %v1318 = vsub.f32 %v1222, %v1270
      %v1319 = vsub.f32 %v1223, %v1271
      %v1320 = vsub.f32 %v1224, %v1272
      %v1321 = vsub.f32 %v1225, %v1273
      %v1322 = vsub.f32 %v1226, %v1274
      %v1323 = vsub.f32 %v1227, %v1275
      %v1324 = vsub.f32 %v1228, %v1276
      %v1325 = vsub.f32 %v1229, %v1277
      %v1326 = vsub.f32 %v1230, %v1278
      %v1327 = vsub.f32 %v1231, %v1279
      %v1328 = vsub.f32 %v1232, %v1280
      %v1329 = vsub.f32 %v1233, %v1281
      %v1330 = vsub.f32 %v1234, %v1282
      %v1331 = vsub.f32 %v1235, %v1283
      %v1332 = vsub.f32 %v1236, %v1284
      %v1333 = vsub.f32 %v1237, %v1285
      %v1334 = vsub.f32 %v1238, %v1286
      %v1335 = vsub.f32 %v1239, %v1287
      %v1336 = vsub.f32 %v1240, %v1288
      %v1337 = vsub.f32 %v1241, %v1289
      %v1338 = vsub.f32 %v1242, %v1290
      %v1339 = vsub.f32 %v1243, %v1291
      %v1340 = vsub.f32 %v1244, %v1292
      %v1341 = vsub.f32 %v1245, %v1293
      %v1342 = vsub.f32 %v1246, %v1294
      %v1343 = vsub.f32 %v1247, %v1295
      %v1344 = vsub.f32 %v1248, %v1296
      %v1345 = vsub.f32 %v1249, %v1297
      %v1346 = vsub.f32 %v1250, %v1298
      %v1347 = vsub.f32 %v1251, %v1299
      %v1348 = vsub.f32 %v1252, %v1300
      %v1349 = vsub.f32 %v1253, %v1301
      %v1350 = vsub.f32 %v1254, %v1302
      %v1351 = vsub.f32 %v1255, %v1303
      %v1352 = vsub.f32 %v1256, %v1304
      %v1353 = vsub.f32 %v1257, %v1305
      %v1354 = vsub.f32 %v1258, %v1306
      %v1355 = vsub.f32 %v1259, %v1307
      %v1356 = vsub.f32 %v1260, %v1308
      %v1357 = vsub.f32 %v1261, %v1309
      %v1358 = vsub.f32 %v1262, %v1310
      %v1359 = vsub.f32 %v1263, %v1311
      %v1360 = vmax.f32 %v1312, 0.0
      %v1361 = vmax.f32 %v1313, 0.0
      %v1362 = vmax.f32 %v1314, 0.0
      %v1363 = vmax.f32 %v1315, 0.0
      %v1364 = vmax.f32 %v1316, 0.0
      %v1365 = vmax.f32 %v1317, 0.0
      %v1366 = vmax.f32 %v1318, 0.0
      %v1367 = vmax.f32 %v1319, 0.0
      %v1368 = vmax.f32 %v1320, 0.0
      %v1369 = vmax.f32 %v1321, 0.0
      %v1370 = vmax.f32 %v1322, 0.0
      %v1371 = vmax.f32 %v1323, 0.0
      %v1372 = vmax.f32 %v1324, 0.0
      %v1373 = vmax.f32 %v1325, 0.0
      %v1374 = vmax.f32 %v1326, 0.0
      %v1375 = vmax.f32 %v1327, 0.0
      %v1376 = vmax.f32 %v1328, 0.0
      %v1377 = vmax.f32 %v1329, 0.0
      %v1378 = vmax.f32 %v1330, 0.0
      %v1379 = vmax.f32 %v1331, 0.0
      %v1380 = vmax.f32 %v1332, 0.0
      %v1381 = vmax.f32 %v1333, 0.0
      %v1382 = vmax.f32 %v1334, 0.0
      %v1383 = vmax.f32 %v1335, 0.0
      %v1384 = vmax.f32 %v1336, 0.0
      %v1385 = vmax.f32 %v1337, 0.0
      %v1386 = vmax.f32 %v1338, 0.0
      %v1387 = vmax.f32 %v1339, 0.0
      %v1388 = vmax.f32 %v1340, 0.0
      %v1389 = vmax.f32 %v1341, 0.0
      %v1390 = vmax.f32 %v1342, 0.0
      %v1391 = vmax.f32 %v1343, 0.0
      %v1392 = vmax.f32 %v1344, 0.0
      %v1393 = vmax.f32 %v1345, 0.0
      %v1394 = vmax.f32 %v1346, 0.0
      %v1395 = vmax.f32 %v1347, 0.0
      %v1396 = vmax.f32 %v1348, 0.0
      %v1397 = vmax.f32 %v1349, 0.0
      %v1398 = vmax.f32 %v1350, 0.0
      %v1399 = vmax.f32 %v1351, 0.0
      %v1400 = vmax.f32 %v1352, 0.0
      %v1401 = vmax.f32 %v1353, 0.0
      %v1402 = vmax.f32 %v1354, 0.0
      %v1403 = vmax.f32 %v1355, 0.0
      %v1404 = vmax.f32 %v1356, 0.0
      %v1405 = vmax.f32 %v1357, 0.0
      %v1406 = vmax.f32 %v1358, 0.0
      %v1407 = vmax.f32 %v1359, 0.0
      %v1408 = vld [vmem:[%s161] sm:$0xff]
      %v1409 = vld [vmem:[%s161 + $0x8] sm:$0xff]
      %v1410 = vld [vmem:[%s161 + $0x10] sm:$0xff]
      %v1411 = vld [vmem:[%s161 + $0x18] sm:$0xff]
      %v1412 = vld [vmem:[%s161 + $0x20] sm:$0xff]
      %v1413 = vld [vmem:[%s161 + $0x28] sm:$0xff]
      %v1414 = vld [vmem:[%s161 + $0x30] sm:$0xff]
      %v1415 = vld [vmem:[%s161 + $0x38] sm:$0xff]
      %v1416 = vld [vmem:[%s161 + $0x40] sm:$0xff]
      %v1417 = vld [vmem:[%s161 + $0x48] sm:$0xff]
      %v1418 = vld [vmem:[%s161 + $0x50] sm:$0xff]
      %v1419 = vld [vmem:[%s161 + $0x58] sm:$0xff]
      %v1420 = vld [vmem:[%s161 + $0x60] sm:$0xff]
      %v1421 = vld [vmem:[%s161 + $0x68] sm:$0xff]
      %v1422 = vld [vmem:[%s161 + $0x70] sm:$0xff]
      %v1423 = vld [vmem:[%s161 + $0x78] sm:$0xff]
      %v1424 = vld [vmem:[%s161 + $0x80] sm:$0xff]
      %v1425 = vld [vmem:[%s161 + $0x88] sm:$0xff]
      %v1426 = vld [vmem:[%s161 + $0x90] sm:$0xff]
      %v1427 = vld [vmem:[%s161 + $0x98] sm:$0xff]
      %v1428 = vld [vmem:[%s161 + $0xa0] sm:$0xff]
      %v1429 = vld [vmem:[%s161 + $0xa8] sm:$0xff]
      %v1430 = vld [vmem:[%s161 + $0xb0] sm:$0xff]
      %v1431 = vld [vmem:[%s161 + $0xb8] sm:$0xff]
      %v1432 = vld [vmem:[%s161 + $0xc0] sm:$0xff]
      %v1433 = vld [vmem:[%s161 + $0xc8] sm:$0xff]
      %v1434 = vld [vmem:[%s161 + $0xd0] sm:$0xff]
      %v1435 = vld [vmem:[%s161 + $0xd8] sm:$0xff]
      %v1436 = vld [vmem:[%s161 + $0xe0] sm:$0xff]
      %v1437 = vld [vmem:[%s161 + $0xe8] sm:$0xff]
      %v1438 = vld [vmem:[%s161 + $0xf0] sm:$0xff]
      %v1439 = vld [vmem:[%s161 + $0xf8] sm:$0xff]
      %v1440 = vld [vmem:[%s161 + $0x100] sm:$0xff]
      %v1441 = vld [vmem:[%s161 + $0x108] sm:$0xff]
      %v1442 = vld [vmem:[%s161 + $0x110] sm:$0xff]
      %v1443 = vld [vmem:[%s161 + $0x118] sm:$0xff]
      %v1444 = vld [vmem:[%s161 + $0x120] sm:$0xff]
      %v1445 = vld [vmem:[%s161 + $0x128] sm:$0xff]
      %v1446 = vld [vmem:[%s161 + $0x130] sm:$0xff]
      %v1447 = vld [vmem:[%s161 + $0x138] sm:$0xff]
      %v1448 = vld [vmem:[%s161 + $0x140] sm:$0xff]
      %v1449 = vld [vmem:[%s161 + $0x148] sm:$0xff]
      %v1450 = vld [vmem:[%s161 + $0x150] sm:$0xff]
      %v1451 = vld [vmem:[%s161 + $0x158] sm:$0xff]
      %v1452 = vld [vmem:[%s161 + $0x160] sm:$0xff]
      %v1453 = vld [vmem:[%s161 + $0x168] sm:$0xff]
      %v1454 = vld [vmem:[%s161 + $0x170] sm:$0xff]
      %v1455 = vld [vmem:[%s161 + $0x178] sm:$0xff]
      %v1456 = vadd.f32 %v1360, 0.001
      %v1457 = vadd.f32 %v1361, 0.001
      %v1458 = vadd.f32 %v1362, 0.001
      %v1459 = vadd.f32 %v1363, 0.001
      %v1460 = vadd.f32 %v1364, 0.001
      %v1461 = vadd.f32 %v1365, 0.001
      %v1462 = vadd.f32 %v1366, 0.001
      %v1463 = vadd.f32 %v1367, 0.001
      %v1464 = vadd.f32 %v1368, 0.001
      %v1465 = vadd.f32 %v1369, 0.001
      %v1466 = vadd.f32 %v1370, 0.001
      %v1467 = vadd.f32 %v1371, 0.001
      %v1468 = vadd.f32 %v1372, 0.001
      %v1469 = vadd.f32 %v1373, 0.001
      %v1470 = vadd.f32 %v1374, 0.001
      %v1471 = vadd.f32 %v1375, 0.001
      %v1472 = vadd.f32 %v1376, 0.001
      %v1473 = vadd.f32 %v1377, 0.001
      %v1474 = vadd.f32 %v1378, 0.001
      %v1475 = vadd.f32 %v1379, 0.001
      %v1476 = vadd.f32 %v1380, 0.001
      %v1477 = vadd.f32 %v1381, 0.001
      %v1478 = vadd.f32 %v1382, 0.001
      %v1479 = vadd.f32 %v1383, 0.001
      %v1480 = vadd.f32 %v1384, 0.001
      %v1481 = vadd.f32 %v1385, 0.001
      %v1482 = vadd.f32 %v1386, 0.001
      %v1483 = vadd.f32 %v1387, 0.001
      %v1484 = vadd.f32 %v1388, 0.001
      %v1485 = vadd.f32 %v1389, 0.001
      %v1486 = vadd.f32 %v1390, 0.001
      %v1487 = vadd.f32 %v1391, 0.001
      %v1488 = vadd.f32 %v1392, 0.001
      %v1489 = vadd.f32 %v1393, 0.001
      %v1490 = vadd.f32 %v1394, 0.001
      %v1491 = vadd.f32 %v1395, 0.001
      %v1492 = vadd.f32 %v1396, 0.001
      %v1493 = vadd.f32 %v1397, 0.001
      %v1494 = vadd.f32 %v1398, 0.001
      %v1495 = vadd.f32 %v1399, 0.001
      %v1496 = vadd.f32 %v1400, 0.001
      %v1497 = vadd.f32 %v1401, 0.001
      %v1498 = vadd.f32 %v1402, 0.001
      %v1499 = vadd.f32 %v1403, 0.001
      %v1500 = vadd.f32 %v1404, 0.001
      %v1501 = vadd.f32 %v1405, 0.001
      %v1502 = vadd.f32 %v1406, 0.001
      %v1503 = vadd.f32 %v1407, 0.001
      %v1504 = vrsqrt.pop %v1456
      %v1505 = vrsqrt.pop %v1457
      %v1506 = vrsqrt.pop %v1458
      %v1507 = vrsqrt.pop %v1459
      %v1508 = vrsqrt.pop %v1460
      %v1509 = vrsqrt.pop %v1461
      %v1510 = vrsqrt.pop %v1462
      %v1511 = vrsqrt.pop %v1463
      %v1512 = vrsqrt.pop %v1464
      %v1513 = vrsqrt.pop %v1465
      %v1514 = vrsqrt.pop %v1466
      %v1515 = vrsqrt.pop %v1467
      %v1516 = vrsqrt.pop %v1468
      %v1517 = vrsqrt.pop %v1469
      %v1518 = vrsqrt.pop %v1470
      %v1519 = vrsqrt.pop %v1471
      %v1520 = vrsqrt.pop %v1472
      %v1521 = vrsqrt.pop %v1473
      %v1522 = vrsqrt.pop %v1474
      %v1523 = vrsqrt.pop %v1475
      %v1524 = vrsqrt.pop %v1476
      %v1525 = vrsqrt.pop %v1477
      %v1526 = vrsqrt.pop %v1478
      %v1527 = vrsqrt.pop %v1479
      %v1528 = vrsqrt.pop %v1480
      %v1529 = vrsqrt.pop %v1481
      %v1530 = vrsqrt.pop %v1482
      %v1531 = vrsqrt.pop %v1483
      %v1532 = vrsqrt.pop %v1484
      %v1533 = vrsqrt.pop %v1485
      %v1534 = vrsqrt.pop %v1486
      %v1535 = vrsqrt.pop %v1487
      %v1536 = vrsqrt.pop %v1488
      %v1537 = vrsqrt.pop %v1489
      %v1538 = vrsqrt.pop %v1490
      %v1539 = vrsqrt.pop %v1491
      %v1540 = vrsqrt.pop %v1492
      %v1541 = vrsqrt.pop %v1493
      %v1542 = vrsqrt.pop %v1494
      %v1543 = vrsqrt.pop %v1495
      %v1544 = vrsqrt.pop %v1496
      %v1545 = vrsqrt.pop %v1497
      %v1546 = vrsqrt.pop %v1498
      %v1547 = vrsqrt.pop %v1499
      %v1548 = vrsqrt.pop %v1500
      %v1549 = vrsqrt.pop %v1501
      %v1550 = vrsqrt.pop %v1502
      %v1551 = vrsqrt.pop %v1503
      %v1552 = vmul.f32 %v1504, %v1408
      %v1553 = vmul.f32 %v1505, %v1409
      %v1554 = vmul.f32 %v1506, %v1410
      %v1555 = vmul.f32 %v1507, %v1411
      %v1556 = vmul.f32 %v1508, %v1412
      %v1557 = vmul.f32 %v1509, %v1413
      %v1558 = vmul.f32 %v1510, %v1414
      %v1559 = vmul.f32 %v1511, %v1415
      %v1560 = vmul.f32 %v1512, %v1416
      %v1561 = vmul.f32 %v1513, %v1417
      %v1562 = vmul.f32 %v1514, %v1418
      %v1563 = vmul.f32 %v1515, %v1419
      %v1564 = vmul.f32 %v1516, %v1420
      %v1565 = vmul.f32 %v1517, %v1421
      %v1566 = vmul.f32 %v1518, %v1422
      %v1567 = vmul.f32 %v1519, %v1423
      %v1568 = vmul.f32 %v1520, %v1424
      %v1569 = vmul.f32 %v1521, %v1425
      %v1570 = vmul.f32 %v1522, %v1426
      %v1571 = vmul.f32 %v1523, %v1427
      %v1572 = vmul.f32 %v1524, %v1428
      %v1573 = vmul.f32 %v1525, %v1429
      %v1574 = vmul.f32 %v1526, %v1430
      %v1575 = vmul.f32 %v1527, %v1431
      %v1576 = vmul.f32 %v1528, %v1432
      %v1577 = vmul.f32 %v1529, %v1433
      %v1578 = vmul.f32 %v1530, %v1434
      %v1579 = vmul.f32 %v1531, %v1435
      %v1580 = vmul.f32 %v1532, %v1436
      %v1581 = vmul.f32 %v1533, %v1437
      %v1582 = vmul.f32 %v1534, %v1438
      %v1583 = vmul.f32 %v1535, %v1439
      %v1584 = vmul.f32 %v1536, %v1440
      %v1585 = vmul.f32 %v1537, %v1441
      %v1586 = vmul.f32 %v1538, %v1442
      %v1587 = vmul.f32 %v1539, %v1443
      %v1588 = vmul.f32 %v1540, %v1444
      %v1589 = vmul.f32 %v1541, %v1445
      %v1590 = vmul.f32 %v1542, %v1446
      %v1591 = vmul.f32 %v1543, %v1447
      %v1592 = vmul.f32 %v1544, %v1448
      %v1593 = vmul.f32 %v1545, %v1449
      %v1594 = vmul.f32 %v1546, %v1450
      %v1595 = vmul.f32 %v1547, %v1451
      %v1596 = vmul.f32 %v1548, %v1452
      %v1597 = vmul.f32 %v1549, %v1453
      %v1598 = vmul.f32 %v1550, %v1454
      %v1599 = vmul.f32 %v1551, %v1455
      %v1600 = vmul.f32 %v1168, %v1552
      %v1601 = vmul.f32 %v1169, %v1553
      %v1602 = vmul.f32 %v1170, %v1554
      %v1603 = vmul.f32 %v1171, %v1555
      %v1604 = vmul.f32 %v1172, %v1556
      %v1605 = vmul.f32 %v1173, %v1557
      %v1606 = vmul.f32 %v1174, %v1558
      %v1607 = vmul.f32 %v1175, %v1559
      %v1608 = vmul.f32 %v1176, %v1560
      %v1609 = vmul.f32 %v1177, %v1561
      %v1610 = vmul.f32 %v1178, %v1562
      %v1611 = vmul.f32 %v1179, %v1563
      %v1612 = vmul.f32 %v1180, %v1564
      %v1613 = vmul.f32 %v1181, %v1565
      %v1614 = vmul.f32 %v1182, %v1566
      %v1615 = vmul.f32 %v1183, %v1567
      %v1616 = vmul.f32 %v1184, %v1568
      %v1617 = vmul.f32 %v1185, %v1569
      %v1618 = vmul.f32 %v1186, %v1570
      %v1619 = vmul.f32 %v1187, %v1571
      %v1620 = vmul.f32 %v1188, %v1572
      %v1621 = vmul.f32 %v1189, %v1573
      %v1622 = vmul.f32 %v1190, %v1574
      %v1623 = vmul.f32 %v1191, %v1575
      %v1624 = vmul.f32 %v1192, %v1576
      %v1625 = vmul.f32 %v1193, %v1577
      %v1626 = vmul.f32 %v1194, %v1578
      %v1627 = vmul.f32 %v1195, %v1579
      %v1628 = vmul.f32 %v1196, %v1580
      %v1629 = vmul.f32 %v1197, %v1581
      %v1630 = vmul.f32 %v1198, %v1582
      %v1631 = vmul.f32 %v1199, %v1583
      %v1632 = vmul.f32 %v1200, %v1584
      %v1633 = vmul.f32 %v1201, %v1585
      %v1634 = vmul.f32 %v1202, %v1586
      %v1635 = vmul.f32 %v1203, %v1587
      %v1636 = vmul.f32 %v1204, %v1588
      %v1637 = vmul.f32 %v1205, %v1589
      %v1638 = vmul.f32 %v1206, %v1590
      %v1639 = vmul.f32 %v1207, %v1591
      %v1640 = vmul.f32 %v1208, %v1592
      %v1641 = vmul.f32 %v1209, %v1593
      %v1642 = vmul.f32 %v1210, %v1594
      %v1643 = vmul.f32 %v1211, %v1595
      %v1644 = vmul.f32 %v1212, %v1596
      %v1645 = vmul.f32 %v1213, %v1597
      %v1646 = vmul.f32 %v1214, %v1598
      %v1647 = vmul.f32 %v1215, %v1599
      %1696 = vrot.lane.b32.xlu0 %v1600, 1
      %v1697 = vpop.permute.xlu0 %1696
      %1698 = vrot.lane.b32.xlu0 %v1601, 1
      %v1699 = vpop.permute.xlu0 %1698
      %1700 = vrot.lane.b32.xlu0 %v1602, 1
      %v1701 = vpop.permute.xlu0 %1700
      %1702 = vrot.lane.b32.xlu0 %v1603, 1
      %v1703 = vpop.permute.xlu0 %1702
      %1704 = vrot.lane.b32.xlu0 %v1604, 1
      %v1705 = vpop.permute.xlu0 %1704
      %1706 = vrot.lane.b32.xlu0 %v1605, 1
      %v1707 = vpop.permute.xlu0 %1706
      %1708 = vrot.lane.b32.xlu0 %v1606, 1
      %v1709 = vpop.permute.xlu0 %1708
      %1710 = vrot.lane.b32.xlu0 %v1607, 1
      %v1711 = vpop.permute.xlu0 %1710
      %1712 = vrot.lane.b32.xlu0 %v1608, 1
      %v1713 = vpop.permute.xlu0 %1712
      %1714 = vrot.lane.b32.xlu0 %v1609, 1
      %v1715 = vpop.permute.xlu0 %1714
      %1716 = vrot.lane.b32.xlu0 %v1610, 1
      %v1717 = vpop.permute.xlu0 %1716
      %1718 = vrot.lane.b32.xlu0 %v1611, 1
      %v1719 = vpop.permute.xlu0 %1718
      %1720 = vrot.lane.b32.xlu0 %v1612, 1
      %v1721 = vpop.permute.xlu0 %1720
      %1722 = vrot.lane.b32.xlu0 %v1613, 1
      %v1723 = vpop.permute.xlu0 %1722
      %1724 = vrot.lane.b32.xlu0 %v1614, 1
      %v1725 = vpop.permute.xlu0 %1724
      %1726 = vrot.lane.b32.xlu0 %v1615, 1
      %v1727 = vpop.permute.xlu0 %1726
      %1728 = vrot.lane.b32.xlu0 %v1616, 1
      %v1729 = vpop.permute.xlu0 %1728
      %1730 = vrot.lane.b32.xlu0 %v1617, 1
      %v1731 = vpop.permute.xlu0 %1730
      %1732 = vrot.lane.b32.xlu0 %v1618, 1
      %v1733 = vpop.permute.xlu0 %1732
      %1734 = vrot.lane.b32.xlu0 %v1619, 1
      %v1735 = vpop.permute.xlu0 %1734
      %1736 = vrot.lane.b32.xlu0 %v1620, 1
      %v1737 = vpop.permute.xlu0 %1736
      %1738 = vrot.lane.b32.xlu0 %v1621, 1
      %v1739 = vpop.permute.xlu0 %1738
      %1740 = vrot.lane.b32.xlu0 %v1622, 1
      %v1741 = vpop.permute.xlu0 %1740
      %1742 = vrot.lane.b32.xlu0 %v1623, 1
      %v1743 = vpop.permute.xlu0 %1742
      %1744 = vrot.lane.b32.xlu0 %v1624, 1
      %v1745 = vpop.permute.xlu0 %1744
      %1746 = vrot.lane.b32.xlu0 %v1625, 1
      %v1747 = vpop.permute.xlu0 %1746
      %1748 = vrot.lane.b32.xlu0 %v1626, 1
      %v1749 = vpop.permute.xlu0 %1748
      %1750 = vrot.lane.b32.xlu0 %v1627, 1
      %v1751 = vpop.permute.xlu0 %1750
      %1752 = vrot.lane.b32.xlu0 %v1628, 1
      %v1753 = vpop.permute.xlu0 %1752
      %1754 = vrot.lane.b32.xlu0 %v1629, 1
      %v1755 = vpop.permute.xlu0 %1754
      %1756 = vrot.lane.b32.xlu0 %v1630, 1
      %v1757 = vpop.permute.xlu0 %1756
      %1758 = vrot.lane.b32.xlu0 %v1631, 1
      %v1759 = vpop.permute.xlu0 %1758
      %1760 = vrot.lane.b32.xlu0 %v1632, 1
      %v1761 = vpop.permute.xlu0 %1760
      %1762 = vrot.lane.b32.xlu0 %v1633, 1
      %v1763 = vpop.permute.xlu0 %1762
      %1764 = vrot.lane.b32.xlu0 %v1634, 1
      %v1765 = vpop.permute.xlu0 %1764
      %1766 = vrot.lane.b32.xlu0 %v1635, 1
      %v1767 = vpop.permute.xlu0 %1766
      %1768 = vrot.lane.b32.xlu0 %v1636, 1
      %v1769 = vpop.permute.xlu0 %1768
      %1770 = vrot.lane.b32.xlu0 %v1637, 1
      %v1771 = vpop.permute.xlu0 %1770
      %1772 = vrot.lane.b32.xlu0 %v1638, 1
      %v1773 = vpop.permute.xlu0 %1772
      %1774 = vrot.lane.b32.xlu0 %v1639, 1
      %v1775 = vpop.permute.xlu0 %1774
      %1776 = vrot.lane.b32.xlu0 %v1640, 1
      %v1777 = vpop.permute.xlu0 %1776
      %1778 = vrot.lane.b32.xlu0 %v1641, 1
      %v1779 = vpop.permute.xlu0 %1778
      %1780 = vrot.lane.b32.xlu0 %v1642, 1
      %v1781 = vpop.permute.xlu0 %1780
      %1782 = vrot.lane.b32.xlu0 %v1643, 1
      %v1783 = vpop.permute.xlu0 %1782
      %1784 = vrot.lane.b32.xlu0 %v1644, 1
      %v1785 = vpop.permute.xlu0 %1784
      %1786 = vrot.lane.b32.xlu0 %v1645, 1
      %v1787 = vpop.permute.xlu0 %1786
      %1788 = vrot.lane.b32.xlu0 %v1646, 1
      %v1789 = vpop.permute.xlu0 %1788
      %1790 = vrot.lane.b32.xlu0 %v1647, 1
      %v1791 = vpop.permute.xlu0 %1790
      %v1840 = vsub.f32 %v1408, %v1697
      %v1841 = vsub.f32 %v1409, %v1699
      %v1842 = vsub.f32 %v1410, %v1701
      %v1843 = vsub.f32 %v1411, %v1703
      %v1844 = vsub.f32 %v1412, %v1705
      %v1845 = vsub.f32 %v1413, %v1707
      %v1846 = vsub.f32 %v1414, %v1709
      %v1847 = vsub.f32 %v1415, %v1711
      %v1848 = vsub.f32 %v1416, %v1713
      %v1849 = vsub.f32 %v1417, %v1715
      %v1850 = vsub.f32 %v1418, %v1717
      %v1851 = vsub.f32 %v1419, %v1719
      %v1852 = vsub.f32 %v1420, %v1721
      %v1853 = vsub.f32 %v1421, %v1723
      %v1854 = vsub.f32 %v1422, %v1725
      %v1855 = vsub.f32 %v1423, %v1727
      %v1856 = vsub.f32 %v1424, %v1729
      %v1857 = vsub.f32 %v1425, %v1731
      %v1858 = vsub.f32 %v1426, %v1733
      %v1859 = vsub.f32 %v1427, %v1735
      %v1860 = vsub.f32 %v1428, %v1737
      %v1861 = vsub.f32 %v1429, %v1739
      %v1862 = vsub.f32 %v1430, %v1741
      %v1863 = vsub.f32 %v1431, %v1743
      %v1864 = vsub.f32 %v1432, %v1745
      %v1865 = vsub.f32 %v1433, %v1747
      %v1866 = vsub.f32 %v1434, %v1749
      %v1867 = vsub.f32 %v1435, %v1751
      %v1868 = vsub.f32 %v1436, %v1753
      %v1869 = vsub.f32 %v1437, %v1755
      %v1870 = vsub.f32 %v1438, %v1757
      %v1871 = vsub.f32 %v1439, %v1759
      %v1872 = vsub.f32 %v1440, %v1761
      %v1873 = vsub.f32 %v1441, %v1763
      %v1874 = vsub.f32 %v1442, %v1765
      %v1875 = vsub.f32 %v1443, %v1767
      %v1876 = vsub.f32 %v1444, %v1769
      %v1877 = vsub.f32 %v1445, %v1771
      %v1878 = vsub.f32 %v1446, %v1773
      %v1879 = vsub.f32 %v1447, %v1775
      %v1880 = vsub.f32 %v1448, %v1777
      %v1881 = vsub.f32 %v1449, %v1779
      %v1882 = vsub.f32 %v1450, %v1781
      %v1883 = vsub.f32 %v1451, %v1783
      %v1884 = vsub.f32 %v1452, %v1785
      %v1885 = vsub.f32 %v1453, %v1787
      %v1886 = vsub.f32 %v1454, %v1789
      %v1887 = vsub.f32 %v1455, %v1791
      %1889 = vset.pattern.permute.xlu0 0
      %1890 = vperm.xlu0 %1889, %v1552
      %v1891 = vpop.permute.xlu0 %1890
      %1894 = vset.pattern.permute.xlu0 0
      %1895 = vperm.xlu0 %1894, %v1553
      %v1896 = vpop.permute.xlu0 %1895
      %1899 = vset.pattern.permute.xlu0 0
      %1900 = vperm.xlu0 %1899, %v1554
      %v1901 = vpop.permute.xlu0 %1900
      %1904 = vset.pattern.permute.xlu0 0
      %1905 = vperm.xlu0 %1904, %v1555
      %v1906 = vpop.permute.xlu0 %1905
      %1909 = vset.pattern.permute.xlu0 0
      %1910 = vperm.xlu0 %1909, %v1556
      %v1911 = vpop.permute.xlu0 %1910
      %1914 = vset.pattern.permute.xlu0 0
      %1915 = vperm.xlu0 %1914, %v1557
      %v1916 = vpop.permute.xlu0 %1915
      %1919 = vset.pattern.permute.xlu0 0
      %1920 = vperm.xlu0 %1919, %v1558
      %v1921 = vpop.permute.xlu0 %1920
      %1924 = vset.pattern.permute.xlu0 0
      %1925 = vperm.xlu0 %1924, %v1559
      %v1926 = vpop.permute.xlu0 %1925
      %1929 = vset.pattern.permute.xlu0 0
      %1930 = vperm.xlu0 %1929, %v1560
      %v1931 = vpop.permute.xlu0 %1930
      %1934 = vset.pattern.permute.xlu0 0
      %1935 = vperm.xlu0 %1934, %v1561
      %v1936 = vpop.permute.xlu0 %1935
      %1939 = vset.pattern.permute.xlu0 0
      %1940 = vperm.xlu0 %1939, %v1562
      %v1941 = vpop.permute.xlu0 %1940
      %1944 = vset.pattern.permute.xlu0 0
      %1945 = vperm.xlu0 %1944, %v1563
      %v1946 = vpop.permute.xlu0 %1945
      %1949 = vset.pattern.permute.xlu0 0
      %1950 = vperm.xlu0 %1949, %v1564
      %v1951 = vpop.permute.xlu0 %1950
      %1954 = vset.pattern.permute.xlu0 0
      %1955 = vperm.xlu0 %1954, %v1565
      %v1956 = vpop.permute.xlu0 %1955
      %1959 = vset.pattern.permute.xlu0 0
      %1960 = vperm.xlu0 %1959, %v1566
      %v1961 = vpop.permute.xlu0 %1960
      %1964 = vset.pattern.permute.xlu0 0
      %1965 = vperm.xlu0 %1964, %v1567
      %v1966 = vpop.permute.xlu0 %1965
      %1969 = vset.pattern.permute.xlu0 0
      %1970 = vperm.xlu0 %1969, %v1568
      %v1971 = vpop.permute.xlu0 %1970
      %1974 = vset.pattern.permute.xlu0 0
      %1975 = vperm.xlu0 %1974, %v1569
      %v1976 = vpop.permute.xlu0 %1975
      %1979 = vset.pattern.permute.xlu0 0
      %1980 = vperm.xlu0 %1979, %v1570
      %v1981 = vpop.permute.xlu0 %1980
      %1984 = vset.pattern.permute.xlu0 0
      %1985 = vperm.xlu0 %1984, %v1571
      %v1986 = vpop.permute.xlu0 %1985
      %1989 = vset.pattern.permute.xlu0 0
      %1990 = vperm.xlu0 %1989, %v1572
      %v1991 = vpop.permute.xlu0 %1990
      %1994 = vset.pattern.permute.xlu0 0
      %1995 = vperm.xlu0 %1994, %v1573
      %v1996 = vpop.permute.xlu0 %1995
      %1999 = vset.pattern.permute.xlu0 0
      %2000 = vperm.xlu0 %1999, %v1574
      %v2001 = vpop.permute.xlu0 %2000
      %2004 = vset.pattern.permute.xlu0 0
      %2005 = vperm.xlu0 %2004, %v1575
      %v2006 = vpop.permute.xlu0 %2005
      %2009 = vset.pattern.permute.xlu0 0
      %2010 = vperm.xlu0 %2009, %v1576
      %v2011 = vpop.permute.xlu0 %2010
      %2014 = vset.pattern.permute.xlu0 0
      %2015 = vperm.xlu0 %2014, %v1577
      %v2016 = vpop.permute.xlu0 %2015
      %2019 = vset.pattern.permute.xlu0 0
      %2020 = vperm.xlu0 %2019, %v1578
      %v2021 = vpop.permute.xlu0 %2020
      %2024 = vset.pattern.permute.xlu0 0
      %2025 = vperm.xlu0 %2024, %v1579
      %v2026 = vpop.permute.xlu0 %2025
      %2029 = vset.pattern.permute.xlu0 0
      %2030 = vperm.xlu0 %2029, %v1580
      %v2031 = vpop.permute.xlu0 %2030
      %2034 = vset.pattern.permute.xlu0 0
      %2035 = vperm.xlu0 %2034, %v1581
      %v2036 = vpop.permute.xlu0 %2035
      %2039 = vset.pattern.permute.xlu0 0
      %2040 = vperm.xlu0 %2039, %v1582
      %v2041 = vpop.permute.xlu0 %2040
      %2044 = vset.pattern.permute.xlu0 0
      %2045 = vperm.xlu0 %2044, %v1583
      %v2046 = vpop.permute.xlu0 %2045
      %2049 = vset.pattern.permute.xlu0 0
      %2050 = vperm.xlu0 %2049, %v1584
      %v2051 = vpop.permute.xlu0 %2050
      %2054 = vset.pattern.permute.xlu0 0
      %2055 = vperm.xlu0 %2054, %v1585
      %v2056 = vpop.permute.xlu0 %2055
      %2059 = vset.pattern.permute.xlu0 0
      %2060 = vperm.xlu0 %2059, %v1586
      %v2061 = vpop.permute.xlu0 %2060
      %2064 = vset.pattern.permute.xlu0 0
      %2065 = vperm.xlu0 %2064, %v1587
      %v2066 = vpop.permute.xlu0 %2065
      %2069 = vset.pattern.permute.xlu0 0
      %2070 = vperm.xlu0 %2069, %v1588
      %v2071 = vpop.permute.xlu0 %2070
      %2074 = vset.pattern.permute.xlu0 0
      %2075 = vperm.xlu0 %2074, %v1589
      %v2076 = vpop.permute.xlu0 %2075
      %2079 = vset.pattern.permute.xlu0 0
      %2080 = vperm.xlu0 %2079, %v1590
      %v2081 = vpop.permute.xlu0 %2080
      %2084 = vset.pattern.permute.xlu0 0
      %2085 = vperm.xlu0 %2084, %v1591
      %v2086 = vpop.permute.xlu0 %2085
      %2089 = vset.pattern.permute.xlu0 0
      %2090 = vperm.xlu0 %2089, %v1592
      %v2091 = vpop.permute.xlu0 %2090
      %2094 = vset.pattern.permute.xlu0 0
      %2095 = vperm.xlu0 %2094, %v1593
      %v2096 = vpop.permute.xlu0 %2095
      %2099 = vset.pattern.permute.xlu0 0
      %2100 = vperm.xlu0 %2099, %v1594
      %v2101 = vpop.permute.xlu0 %2100
      %2104 = vset.pattern.permute.xlu0 0
      %2105 = vperm.xlu0 %2104, %v1595
      %v2106 = vpop.permute.xlu0 %2105
      %2109 = vset.pattern.permute.xlu0 0
      %2110 = vperm.xlu0 %2109, %v1596
      %v2111 = vpop.permute.xlu0 %2110
      %2114 = vset.pattern.permute.xlu0 0
      %2115 = vperm.xlu0 %2114, %v1597
      %v2116 = vpop.permute.xlu0 %2115
      %2119 = vset.pattern.permute.xlu0 0
      %2120 = vperm.xlu0 %2119, %v1598
      %v2121 = vpop.permute.xlu0 %2120
      %2124 = vset.pattern.permute.xlu0 0
      %2125 = vperm.xlu0 %2124, %v1599
      %v2126 = vpop.permute.xlu0 %2125
      %v2128 = vmul.f32 %v169, %v1891
      %v2129 = vmul.f32 %v170, %v1896
      %v2130 = vmul.f32 %v171, %v1901
      %v2131 = vmul.f32 %v172, %v1906
      %v2132 = vmul.f32 %v173, %v1911
      %v2133 = vmul.f32 %v174, %v1916
      %v2134 = vmul.f32 %v175, %v1921
      %v2135 = vmul.f32 %v176, %v1926
      %v2136 = vmul.f32 %v177, %v1931
      %v2137 = vmul.f32 %v178, %v1936
      %v2138 = vmul.f32 %v179, %v1941
      %v2139 = vmul.f32 %v180, %v1946
      %v2140 = vmul.f32 %v181, %v1951
      %v2141 = vmul.f32 %v182, %v1956
      %v2142 = vmul.f32 %v183, %v1961
      %v2143 = vmul.f32 %v184, %v1966
      %v2144 = vmul.f32 %v185, %v1971
      %v2145 = vmul.f32 %v186, %v1976
      %v2146 = vmul.f32 %v187, %v1981
      %v2147 = vmul.f32 %v188, %v1986
      %v2148 = vmul.f32 %v189, %v1991
      %v2149 = vmul.f32 %v190, %v1996
      %v2150 = vmul.f32 %v191, %v2001
      %v2151 = vmul.f32 %v192, %v2006
      %v2152 = vmul.f32 %v193, %v2011
      %v2153 = vmul.f32 %v194, %v2016
      %v2154 = vmul.f32 %v195, %v2021
      %v2155 = vmul.f32 %v196, %v2026
      %v2156 = vmul.f32 %v197, %v2031
      %v2157 = vmul.f32 %v198, %v2036
      %v2158 = vmul.f32 %v199, %v2041
      %v2159 = vmul.f32 %v200, %v2046
      %v2160 = vmul.f32 %v201, %v2051
      %v2161 = vmul.f32 %v202, %v2056
      %v2162 = vmul.f32 %v203, %v2061
      %v2163 = vmul.f32 %v204, %v2066
      %v2164 = vmul.f32 %v205, %v2071
      %v2165 = vmul.f32 %v206, %v2076
      %v2166 = vmul.f32 %v207, %v2081
      %v2167 = vmul.f32 %v208, %v2086
      %v2168 = vmul.f32 %v209, %v2091
      %v2169 = vmul.f32 %v210, %v2096
      %v2170 = vmul.f32 %v211, %v2101
      %v2171 = vmul.f32 %v212, %v2106
      %v2172 = vmul.f32 %v213, %v2111
      %v2173 = vmul.f32 %v214, %v2116
      %v2174 = vmul.f32 %v215, %v2121
      %v2175 = vmul.f32 %v216, %v2126
      %2177 = vset.pattern.permute.xlu0 1
      %2178 = vperm.xlu0 %2177, %v1840
      %v2179 = vpop.permute.xlu0 %2178
      %2182 = vset.pattern.permute.xlu0 1
      %2183 = vperm.xlu0 %2182, %v1841
      %v2184 = vpop.permute.xlu0 %2183
      %2187 = vset.pattern.permute.xlu0 1
      %2188 = vperm.xlu0 %2187, %v1842
      %v2189 = vpop.permute.xlu0 %2188
      %2192 = vset.pattern.permute.xlu0 1
      %2193 = vperm.xlu0 %2192, %v1843
      %v2194 = vpop.permute.xlu0 %2193
      %2197 = vset.pattern.permute.xlu0 1
      %2198 = vperm.xlu0 %2197, %v1844
      %v2199 = vpop.permute.xlu0 %2198
      %2202 = vset.pattern.permute.xlu0 1
      %2203 = vperm.xlu0 %2202, %v1845
      %v2204 = vpop.permute.xlu0 %2203
      %2207 = vset.pattern.permute.xlu0 1
      %2208 = vperm.xlu0 %2207, %v1846
      %v2209 = vpop.permute.xlu0 %2208
      %2212 = vset.pattern.permute.xlu0 1
      %2213 = vperm.xlu0 %2212, %v1847
      %v2214 = vpop.permute.xlu0 %2213
      %2217 = vset.pattern.permute.xlu0 1
      %2218 = vperm.xlu0 %2217, %v1848
      %v2219 = vpop.permute.xlu0 %2218
      %2222 = vset.pattern.permute.xlu0 1
      %2223 = vperm.xlu0 %2222, %v1849
      %v2224 = vpop.permute.xlu0 %2223
      %2227 = vset.pattern.permute.xlu0 1
      %2228 = vperm.xlu0 %2227, %v1850
      %v2229 = vpop.permute.xlu0 %2228
      %2232 = vset.pattern.permute.xlu0 1
      %2233 = vperm.xlu0 %2232, %v1851
      %v2234 = vpop.permute.xlu0 %2233
      %2237 = vset.pattern.permute.xlu0 1
      %2238 = vperm.xlu0 %2237, %v1852
      %v2239 = vpop.permute.xlu0 %2238
      %2242 = vset.pattern.permute.xlu0 1
      %2243 = vperm.xlu0 %2242, %v1853
      %v2244 = vpop.permute.xlu0 %2243
      %2247 = vset.pattern.permute.xlu0 1
      %2248 = vperm.xlu0 %2247, %v1854
      %v2249 = vpop.permute.xlu0 %2248
      %2252 = vset.pattern.permute.xlu0 1
      %2253 = vperm.xlu0 %2252, %v1855
      %v2254 = vpop.permute.xlu0 %2253
      %2257 = vset.pattern.permute.xlu0 1
      %2258 = vperm.xlu0 %2257, %v1856
      %v2259 = vpop.permute.xlu0 %2258
      %2262 = vset.pattern.permute.xlu0 1
      %2263 = vperm.xlu0 %2262, %v1857
      %v2264 = vpop.permute.xlu0 %2263
      %2267 = vset.pattern.permute.xlu0 1
      %2268 = vperm.xlu0 %2267, %v1858
      %v2269 = vpop.permute.xlu0 %2268
      %2272 = vset.pattern.permute.xlu0 1
      %2273 = vperm.xlu0 %2272, %v1859
      %v2274 = vpop.permute.xlu0 %2273
      %2277 = vset.pattern.permute.xlu0 1
      %2278 = vperm.xlu0 %2277, %v1860
      %v2279 = vpop.permute.xlu0 %2278
      %2282 = vset.pattern.permute.xlu0 1
      %2283 = vperm.xlu0 %2282, %v1861
      %v2284 = vpop.permute.xlu0 %2283
      %2287 = vset.pattern.permute.xlu0 1
      %2288 = vperm.xlu0 %2287, %v1862
      %v2289 = vpop.permute.xlu0 %2288
      %2292 = vset.pattern.permute.xlu0 1
      %2293 = vperm.xlu0 %2292, %v1863
      %v2294 = vpop.permute.xlu0 %2293
      %2297 = vset.pattern.permute.xlu0 1
      %2298 = vperm.xlu0 %2297, %v1864
      %v2299 = vpop.permute.xlu0 %2298
      %2302 = vset.pattern.permute.xlu0 1
      %2303 = vperm.xlu0 %2302, %v1865
      %v2304 = vpop.permute.xlu0 %2303
      %2307 = vset.pattern.permute.xlu0 1
      %2308 = vperm.xlu0 %2307, %v1866
      %v2309 = vpop.permute.xlu0 %2308
      %2312 = vset.pattern.permute.xlu0 1
      %2313 = vperm.xlu0 %2312, %v1867
      %v2314 = vpop.permute.xlu0 %2313
      %2317 = vset.pattern.permute.xlu0 1
      %2318 = vperm.xlu0 %2317, %v1868
      %v2319 = vpop.permute.xlu0 %2318
      %2322 = vset.pattern.permute.xlu0 1
      %2323 = vperm.xlu0 %2322, %v1869
      %v2324 = vpop.permute.xlu0 %2323
      %2327 = vset.pattern.permute.xlu0 1
      %2328 = vperm.xlu0 %2327, %v1870
      %v2329 = vpop.permute.xlu0 %2328
      %2332 = vset.pattern.permute.xlu0 1
      %2333 = vperm.xlu0 %2332, %v1871
      %v2334 = vpop.permute.xlu0 %2333
      %2337 = vset.pattern.permute.xlu0 1
      %2338 = vperm.xlu0 %2337, %v1872
      %v2339 = vpop.permute.xlu0 %2338
      %2342 = vset.pattern.permute.xlu0 1
      %2343 = vperm.xlu0 %2342, %v1873
      %v2344 = vpop.permute.xlu0 %2343
      %2347 = vset.pattern.permute.xlu0 1
      %2348 = vperm.xlu0 %2347, %v1874
      %v2349 = vpop.permute.xlu0 %2348
      %2352 = vset.pattern.permute.xlu0 1
      %2353 = vperm.xlu0 %2352, %v1875
      %v2354 = vpop.permute.xlu0 %2353
      %2357 = vset.pattern.permute.xlu0 1
      %2358 = vperm.xlu0 %2357, %v1876
      %v2359 = vpop.permute.xlu0 %2358
      %2362 = vset.pattern.permute.xlu0 1
      %2363 = vperm.xlu0 %2362, %v1877
      %v2364 = vpop.permute.xlu0 %2363
      %2367 = vset.pattern.permute.xlu0 1
      %2368 = vperm.xlu0 %2367, %v1878
      %v2369 = vpop.permute.xlu0 %2368
      %2372 = vset.pattern.permute.xlu0 1
      %2373 = vperm.xlu0 %2372, %v1879
      %v2374 = vpop.permute.xlu0 %2373
      %2377 = vset.pattern.permute.xlu0 1
      %2378 = vperm.xlu0 %2377, %v1880
      %v2379 = vpop.permute.xlu0 %2378
      %2382 = vset.pattern.permute.xlu0 1
      %2383 = vperm.xlu0 %2382, %v1881
      %v2384 = vpop.permute.xlu0 %2383
      %2387 = vset.pattern.permute.xlu0 1
      %2388 = vperm.xlu0 %2387, %v1882
      %v2389 = vpop.permute.xlu0 %2388
      %2392 = vset.pattern.permute.xlu0 1
      %2393 = vperm.xlu0 %2392, %v1883
      %v2394 = vpop.permute.xlu0 %2393
      %2397 = vset.pattern.permute.xlu0 1
      %2398 = vperm.xlu0 %2397, %v1884
      %v2399 = vpop.permute.xlu0 %2398
      %2402 = vset.pattern.permute.xlu0 1
      %2403 = vperm.xlu0 %2402, %v1885
      %v2404 = vpop.permute.xlu0 %2403
      %2407 = vset.pattern.permute.xlu0 1
      %2408 = vperm.xlu0 %2407, %v1886
      %v2409 = vpop.permute.xlu0 %2408
      %2412 = vset.pattern.permute.xlu0 1
      %2413 = vperm.xlu0 %2412, %v1887
      %v2414 = vpop.permute.xlu0 %2413
      %v2416 = vadd.f32 %v2128, %v2179
      %v2417 = vadd.f32 %v2129, %v2184
      %v2418 = vadd.f32 %v2130, %v2189
      %v2419 = vadd.f32 %v2131, %v2194
      %v2420 = vadd.f32 %v2132, %v2199
      %v2421 = vadd.f32 %v2133, %v2204
      %v2422 = vadd.f32 %v2134, %v2209
      %v2423 = vadd.f32 %v2135, %v2214
      %v2424 = vadd.f32 %v2136, %v2219
      %v2425 = vadd.f32 %v2137, %v2224
      %v2426 = vadd.f32 %v2138, %v2229
      %v2427 = vadd.f32 %v2139, %v2234
      %v2428 = vadd.f32 %v2140, %v2239
      %v2429 = vadd.f32 %v2141, %v2244
      %v2430 = vadd.f32 %v2142, %v2249
      %v2431 = vadd.f32 %v2143, %v2254
      %v2432 = vadd.f32 %v2144, %v2259
      %v2433 = vadd.f32 %v2145, %v2264
      %v2434 = vadd.f32 %v2146, %v2269
      %v2435 = vadd.f32 %v2147, %v2274
      %v2436 = vadd.f32 %v2148, %v2279
      %v2437 = vadd.f32 %v2149, %v2284
      %v2438 = vadd.f32 %v2150, %v2289
      %v2439 = vadd.f32 %v2151, %v2294
      %v2440 = vadd.f32 %v2152, %v2299
      %v2441 = vadd.f32 %v2153, %v2304
      %v2442 = vadd.f32 %v2154, %v2309
      %v2443 = vadd.f32 %v2155, %v2314
      %v2444 = vadd.f32 %v2156, %v2319
      %v2445 = vadd.f32 %v2157, %v2324
      %v2446 = vadd.f32 %v2158, %v2329
      %v2447 = vadd.f32 %v2159, %v2334
      %v2448 = vadd.f32 %v2160, %v2339
      %v2449 = vadd.f32 %v2161, %v2344
      %v2450 = vadd.f32 %v2162, %v2349
      %v2451 = vadd.f32 %v2163, %v2354
      %v2452 = vadd.f32 %v2164, %v2359
      %v2453 = vadd.f32 %v2165, %v2364
      %v2454 = vadd.f32 %v2166, %v2369
      %v2455 = vadd.f32 %v2167, %v2374
      %v2456 = vadd.f32 %v2168, %v2379
      %v2457 = vadd.f32 %v2169, %v2384
      %v2458 = vadd.f32 %v2170, %v2389
      %v2459 = vadd.f32 %v2171, %v2394
      %v2460 = vadd.f32 %v2172, %v2399
      %v2461 = vadd.f32 %v2173, %v2404
      %v2462 = vadd.f32 %v2174, %v2409
      %v2463 = vadd.f32 %v2175, %v2414
      %2464 = vst.msk [vmem:[%s167] sm:$0xff] %vm217, %v2416
      %2465 = vst.msk [vmem:[%s167 + $0x8] sm:$0xff] %vm217, %v2417
      %2466 = vst.msk [vmem:[%s167 + $0x10] sm:$0xff] %vm217, %v2418
      %2467 = vst.msk [vmem:[%s167 + $0x18] sm:$0xff] %vm217, %v2419
      %2468 = vst.msk [vmem:[%s167 + $0x20] sm:$0xff] %vm217, %v2420
      %2469 = vst.msk [vmem:[%s167 + $0x28] sm:$0xff] %vm217, %v2421
      %2470 = vst.msk [vmem:[%s167 + $0x30] sm:$0xff] %vm217, %v2422
      %2471 = vst.msk [vmem:[%s167 + $0x38] sm:$0xff] %vm217, %v2423
      %2472 = vst.msk [vmem:[%s167 + $0x40] sm:$0xff] %vm217, %v2424
      %2473 = vst.msk [vmem:[%s167 + $0x48] sm:$0xff] %vm217, %v2425
      %2474 = vst.msk [vmem:[%s167 + $0x50] sm:$0xff] %vm217, %v2426
      %2475 = vst.msk [vmem:[%s167 + $0x58] sm:$0xff] %vm217, %v2427
      %2476 = vst.msk [vmem:[%s167 + $0x60] sm:$0xff] %vm217, %v2428
      %2477 = vst.msk [vmem:[%s167 + $0x68] sm:$0xff] %vm217, %v2429
      %2478 = vst.msk [vmem:[%s167 + $0x70] sm:$0xff] %vm217, %v2430
      %2479 = vst.msk [vmem:[%s167 + $0x78] sm:$0xff] %vm217, %v2431
      %2480 = vst.msk [vmem:[%s167 + $0x80] sm:$0xff] %vm217, %v2432
      %2481 = vst.msk [vmem:[%s167 + $0x88] sm:$0xff] %vm217, %v2433
      %2482 = vst.msk [vmem:[%s167 + $0x90] sm:$0xff] %vm217, %v2434
      %2483 = vst.msk [vmem:[%s167 + $0x98] sm:$0xff] %vm217, %v2435
      %2484 = vst.msk [vmem:[%s167 + $0xa0] sm:$0xff] %vm217, %v2436
      %2485 = vst.msk [vmem:[%s167 + $0xa8] sm:$0xff] %vm217, %v2437
      %2486 = vst.msk [vmem:[%s167 + $0xb0] sm:$0xff] %vm217, %v2438
      %2487 = vst.msk [vmem:[%s167 + $0xb8] sm:$0xff] %vm217, %v2439
      %2488 = vst.msk [vmem:[%s167 + $0xc0] sm:$0xff] %vm217, %v2440
      %2489 = vst.msk [vmem:[%s167 + $0xc8] sm:$0xff] %vm217, %v2441
      %2490 = vst.msk [vmem:[%s167 + $0xd0] sm:$0xff] %vm217, %v2442
      %2491 = vst.msk [vmem:[%s167 + $0xd8] sm:$0xff] %vm217, %v2443
      %2492 = vst.msk [vmem:[%s167 + $0xe0] sm:$0xff] %vm217, %v2444
      %2493 = vst.msk [vmem:[%s167 + $0xe8] sm:$0xff] %vm217, %v2445
      %2494 = vst.msk [vmem:[%s167 + $0xf0] sm:$0xff] %vm217, %v2446
      %2495 = vst.msk [vmem:[%s167 + $0xf8] sm:$0xff] %vm217, %v2447
      %2496 = vst.msk [vmem:[%s167 + $0x100] sm:$0xff] %vm217, %v2448
      %2497 = vst.msk [vmem:[%s167 + $0x108] sm:$0xff] %vm217, %v2449
      %2498 = vst.msk [vmem:[%s167 + $0x110] sm:$0xff] %vm217, %v2450
      %2499 = vst.msk [vmem:[%s167 + $0x118] sm:$0xff] %vm217, %v2451
      %2500 = vst.msk [vmem:[%s167 + $0x120] sm:$0xff] %vm217, %v2452
      %2501 = vst.msk [vmem:[%s167 + $0x128] sm:$0xff] %vm217, %v2453
      %2502 = vst.msk [vmem:[%s167 + $0x130] sm:$0xff] %vm217, %v2454
      %2503 = vst.msk [vmem:[%s167 + $0x138] sm:$0xff] %vm217, %v2455
      %2504 = vst.msk [vmem:[%s167 + $0x140] sm:$0xff] %vm217, %v2456
      %2505 = vst.msk [vmem:[%s167 + $0x148] sm:$0xff] %vm217, %v2457
      %2506 = vst.msk [vmem:[%s167 + $0x150] sm:$0xff] %vm217, %v2458
      %2507 = vst.msk [vmem:[%s167 + $0x158] sm:$0xff] %vm217, %v2459
      %2508 = vst.msk [vmem:[%s167 + $0x160] sm:$0xff] %vm217, %v2460
      %2509 = vst.msk [vmem:[%s167 + $0x168] sm:$0xff] %vm217, %v2461
      %2510 = vst.msk [vmem:[%s167 + $0x170] sm:$0xff] %vm217, %v2462
      %2511 = vst.msk [vmem:[%s167 + $0x178] sm:$0xff] %vm217, %v2463
      %s2512 = smul.u32 48, %s13
      %p2513 = scmp.lt.s32.totalorder %s2512, 191
      %s2514 = scalar_select %p2513, %s2512, 191
      %s2515 = smul.addr %s2514, 8
      %s2516 = scalar_lea.vmem %s2, %s2515
      // Predicated region
      $region29: #{tpu_custom_call.1} parent=27 // pred_check
        %p2517 = pneg %p83
      $region30: #{tpu_custom_call.1} parent=27 // pred_check_branch
        %2519 = sbr.rel (%p2517) target = $region32
      $region31: #{tpu_custom_call.1} parent=27 // pred_region
        %s2520 = smul.u32 48, %s13
      $region32: #{tpu_custom_call.1} parent=27 // pred_fallthru
        _
    $region28: #{tpu_custom_call.1} parent=5 // pred_fallthru
      _
    %p2521 = scmp.le.s32.totalorder 2, %s8
    // Predicated region
    $region33: #{tpu_custom_call.1} parent=5 // pred_check
      %p2522 = pneg %p2521
    $region34: #{tpu_custom_call.1} parent=5 // pred_check_branch
      %2524 = sbr.rel (%p2522) target = $region36
    $region35: #{tpu_custom_call.1} parent=5 // pred_region
      %s2525 = ssub.s32 %s8, 2
      // Predicated region
      $region37: #{tpu_custom_call.1} parent=35 // pred_check
        %p2526 = pneg %p89
      $region38: #{tpu_custom_call.1} parent=35 // pred_check_branch
        %2528 = sbr.rel (%p2526) target = $region40
      $region39: #{tpu_custom_call.1} parent=35 // pred_region
        %s2529 = smul.u32 48, %s14
        %p2530 = scmp.lt.s32.totalorder %s2529, 191
        %s2531 = scalar_select %p2530, %s2529, 191
        %s2532 = smul.addr %s2531, 8
        %s2533 = scalar_lea.vmem %s2, %s2532
      $region40: #{tpu_custom_call.1} parent=35 // pred_fallthru
        _
    $region36: #{tpu_custom_call.1} parent=5 // pred_fallthru
      _
  $region6: #{tpu_custom_call.1} parent=0 // loop_footer
    %s12 = sadd.s32 1, %s8
  $region7: #{tpu_custom_call.1} parent=0 // loop_footer_branch
    %7 = sbr.rel target = $region3
  $region8: #{tpu_custom_call.1} parent=0 // loop_exit
    _

</llo_original>
